<compile_context>
chip_gen: v7x
topology: tpu7x:2x2x1
jax: 0.10.0
libtpu: 0.0.40
codegen_flags: <defaults>
</compile_context>

<pallas_src>
import jax
import jax.numpy as jnp
from jax import lax
from jax.experimental import pallas as pl
from jax.experimental.pallas import tpu as pltpu

BN_EPS = 1e-5
LANE = 128


def simple_lstm_kernel(
    x_ref,                                    # (B, T, I)   bf16, batch-first
    wih1_ref, whh1_ref, b1_ref,               # (I,4Hp) bf16, (Hp,4Hp) bf16, (1,4Hp) f32
    g1_ref, be1_ref, m1_ref, v1_ref,          # BN1 params, each (1, Hp) f32
    wih2_ref, b2_ref,                         # (Hp,4Hp2) bf16, (1,4Hp2) f32
    g2_ref, be2_ref, m2_ref, v2_ref,          # BN2 params, each (1, Hp2) f32
    wfc_ref, bfc_ref,                         # (Hp2, 2) bf16, (1, 2) f32
    out_ref,                                  # (B, 2) f32
):
    B, T, I = x_ref.shape
    Hp = whh1_ref.shape[0]
    Hp2 = wfc_ref.shape[0]

    # ---- Hoisted input projection for LSTM-1: one MXU matmul over all T ----
    x_all = x_ref[...].reshape(B * T, I)                       # bf16
    proj = jnp.dot(x_all, wih1_ref[...],
                   preferred_element_type=jnp.float32)         # (B*T, 4Hp) f32
    proj = proj.reshape(B, T, 4 * Hp) + b1_ref[...]            # bias folded in

    whh1 = whh1_ref[...]                                       # bf16, resident

    # ---- LSTM layer 1: fully-unrolled recurrence, keep only last h ----
    h = jnp.zeros((B, Hp), jnp.float32)
    c = jnp.zeros((B, Hp), jnp.float32)
    for t in range(T):                                         # static unroll
        gates = proj[:, t, :] + jnp.dot(
            h.astype(jnp.bfloat16), whh1,
            preferred_element_type=jnp.float32)                # (B, 4Hp) f32
        # Lane-aligned gate slices (Hp is a multiple of 128). Order: i, f, g, o.
        i_g = jax.nn.sigmoid(gates[:, 0 * Hp:1 * Hp])
        f_g = jax.nn.sigmoid(gates[:, 1 * Hp:2 * Hp])
        g_g = jnp.tanh(gates[:, 2 * Hp:3 * Hp])
        o_g = jax.nn.sigmoid(gates[:, 3 * Hp:4 * Hp])
        c = f_g * c + i_g * g_g
        h = o_g * jnp.tanh(c)

    # ---- BatchNorm1d #1 (eval mode) + dropout1 (identity) ----
    y1 = (h - m1_ref[...]) * lax.rsqrt(v1_ref[...] + BN_EPS) * g1_ref[...] \
        + be1_ref[...]

    # ---- LSTM layer 2: single timestep from zero state ----
    # W_hh2 multiplies h0 == 0 and the forget gate multiplies c0 == 0, so only
    # the input projection and the i / g / o gates matter.
    gates2 = jnp.dot(y1.astype(jnp.bfloat16), wih2_ref[...],
                     preferred_element_type=jnp.float32) + b2_ref[...]
    i2 = jax.nn.sigmoid(gates2[:, 0 * Hp2:1 * Hp2])
    g_cell2 = jnp.tanh(gates2[:, 2 * Hp2:3 * Hp2])
    o2 = jax.nn.sigmoid(gates2[:, 3 * Hp2:4 * Hp2])
    c2 = i2 * g_cell2
    h2 = o2 * jnp.tanh(c2)

    # ---- BatchNorm1d #2 (eval mode) + dropout2 (identity) ----
    y2 = (h2 - m2_ref[...]) * lax.rsqrt(v2_ref[...] + BN_EPS) * g2_ref[...] \
        + be2_ref[...]

    # ---- Final linear layer (H2 -> 2) ----
    out = jnp.dot(y2.astype(jnp.bfloat16), wfc_ref[...],
                  preferred_element_type=jnp.float32) + bfc_ref[...]
    out_ref[...] = out.astype(out_ref.dtype)


# ------------------------- wrapper-side packing helpers ----------------------

def _round_up(n, m):
    return ((n + m - 1) // m) * m


def _pack_lstm_weight(w, h, hp, f, fp):
    """PyTorch (4h, f) gate-stacked weight -> padded, transposed (fp, 4hp) bf16."""
    w4 = w.reshape(4, h, f)
    w4 = jnp.pad(w4, ((0, 0), (0, hp - h), (0, fp - f)))
    return jnp.transpose(w4, (2, 0, 1)).reshape(fp, 4 * hp).astype(jnp.bfloat16)


def _pack_gate_bias(b, h, hp):
    b4 = jnp.pad(b.reshape(4, h), ((0, 0), (0, hp - h)))
    return b4.reshape(1, 4 * hp).astype(jnp.float32)


def _pack_vec(v, n, npad, fill=0.0):
    return jnp.pad(v, (0, npad - n),
                   constant_values=fill).reshape(1, npad).astype(jnp.float32)


def init_params(key, input_size, hidden_size):
    """Deterministic parameter init mirroring PyTorch shapes/defaults."""
    h, h2 = hidden_size, hidden_size // 2
    ks = jax.random.split(key, 10)

    def u(k, shape, bound):
        return jax.random.uniform(k, shape, jnp.float32, -bound, bound)

    k1 = 1.0 / jnp.sqrt(h)
    k2 = 1.0 / jnp.sqrt(h2)
    return dict(
        # LSTM1: W_ih (4H, I), W_hh (4H, H), b_ih + b_hh fused into b1 (4H,)
        w_ih1=u(ks[0], (4 * h, input_size), k1),
        w_hh1=u(ks[1], (4 * h, h), k1),
        b1=u(ks[2], (4 * h,), k1) + u(ks[3], (4 * h,), k1),
        # BN1 (eval): gamma=1, beta=0, running_mean=0, running_var=1
        g1=jnp.ones((h,), jnp.float32), be1=jnp.zeros((h,), jnp.float32),
        m1=jnp.zeros((h,), jnp.float32), v1=jnp.ones((h,), jnp.float32),
        # LSTM2 (w_hh2 kept for parity with the PyTorch module; it cannot
        # affect a single-timestep forward from zero state)
        w_ih2=u(ks[4], (4 * h2, h), k2),
        w_hh2=u(ks[5], (4 * h2, h2), k2),
        b2=u(ks[6], (4 * h2,), k2) + u(ks[7], (4 * h2,), k2),
        # BN2
        g2=jnp.ones((h2,), jnp.float32), be2=jnp.zeros((h2,), jnp.float32),
        m2=jnp.zeros((h2,), jnp.float32), v2=jnp.ones((h2,), jnp.float32),
        # FC: (2, H2) weight, (2,) bias
        w_fc=u(ks[8], (2, h2), k2),
        b_fc=u(ks[9], (2,), k2),
    )


@jax.jit
def simple_lstm_forward(x, params):
    """x: (B, T, input_size) float32, batch_first like the PyTorch module."""
    B, T, I = x.shape
    H = params["g1"].shape[0]
    H2 = params["g2"].shape[0]
    Hp = _round_up(H, LANE)      # lane-aligned hidden sizes (gate slices free)
    Hp2 = _round_up(H2, LANE)

    args = (
        x.astype(jnp.bfloat16),                                       # (B,T,I)
        _pack_lstm_weight(params["w_ih1"], H, Hp, I, I),              # (I,4Hp)
        _pack_lstm_weight(params["w_hh1"], H, Hp, H, Hp),             # (Hp,4Hp)
        _pack_gate_bias(params["b1"], H, Hp),                         # (1,4Hp)
        _pack_vec(params["g1"], H, Hp, 1.0), _pack_vec(params["be1"], H, Hp),
        _pack_vec(params["m1"], H, Hp), _pack_vec(params["v1"], H, Hp, 1.0),
        _pack_lstm_weight(params["w_ih2"], H2, Hp2, H, Hp),           # (Hp,4Hp2)
        _pack_gate_bias(params["b2"], H2, Hp2),                       # (1,4Hp2)
        _pack_vec(params["g2"], H2, Hp2, 1.0), _pack_vec(params["be2"], H2, Hp2),
        _pack_vec(params["m2"], H2, Hp2), _pack_vec(params["v2"], H2, Hp2, 1.0),
        jnp.pad(params["w_fc"], ((0, 0), (0, Hp2 - H2))).T.astype(jnp.bfloat16),
        params["b_fc"].reshape(1, 2).astype(jnp.float32),
    )

    vmem = pl.BlockSpec(memory_space=pltpu.MemorySpace.VMEM)
    return pl.pallas_call(
        simple_lstm_kernel,
        out_shape=jax.ShapeDtypeStruct((B, 2), jnp.float32),
        in_specs=[vmem] * len(args),
        out_specs=vmem,
    )(*args)


if __name__ == "__main__":
    # Small shapes: batch=2, seq=8, input_size=16, hidden_size=32 (H2=16).
    B, T, INPUT_SIZE, HIDDEN = 2, 8, 16, 32

    key = jax.random.PRNGKey(0)
    kx, kp = jax.random.split(key)
    x = jax.random.normal(kx, (B, T, INPUT_SIZE), jnp.float32)
    params = init_params(kp, INPUT_SIZE, HIDDEN)

    out = simple_lstm_forward(x, params)
    jax.block_until_ready(out)
    assert out.shape == (B, 2) and out.dtype == jnp.float32
    assert bool(jnp.all(jnp.isfinite(out)))
    print("KERNEL_OK")
</pallas_src>

<mosaic_0001>
module attributes {stable_mosaic.version = 11 : i64} {
  func.func @simple_lstm_kernel(%arg0: memref<2x8x16xbf16, #tpu.memory_space<vmem>>, %arg1: memref<16x512xbf16, #tpu.memory_space<vmem>>, %arg2: memref<128x512xbf16, #tpu.memory_space<vmem>>, %arg3: memref<1x512xf32, #tpu.memory_space<vmem>>, %arg4: memref<1x128xf32, #tpu.memory_space<vmem>>, %arg5: memref<1x128xf32, #tpu.memory_space<vmem>>, %arg6: memref<1x128xf32, #tpu.memory_space<vmem>>, %arg7: memref<1x128xf32, #tpu.memory_space<vmem>>, %arg8: memref<128x512xbf16, #tpu.memory_space<vmem>>, %arg9: memref<1x512xf32, #tpu.memory_space<vmem>>, %arg10: memref<1x128xf32, #tpu.memory_space<vmem>>, %arg11: memref<1x128xf32, #tpu.memory_space<vmem>>, %arg12: memref<1x128xf32, #tpu.memory_space<vmem>>, %arg13: memref<1x128xf32, #tpu.memory_space<vmem>>, %arg14: memref<128x2xbf16, #tpu.memory_space<vmem>>, %arg15: memref<1x2xf32, #tpu.memory_space<vmem>>, %arg16: memref<2x2xf32, #tpu.memory_space<vmem>>) attributes {dimension_semantics = [], scalar_prefetch = 0 : i64, scratch_operands = 0 : i64, tpu.core_type = #tpu.core_type<tc>} {
    %c0 = arith.constant 0 : index
    %c0_0 = arith.constant 0 : index
    %c0_1 = arith.constant 0 : index
    %0 = vector.load %arg0[%c0, %c0_0, %c0_1] : memref<2x8x16xbf16, #tpu.memory_space<vmem>>, vector<2x8x16xbf16>
    %1 = vector.shape_cast %0 : vector<2x8x16xbf16> to vector<16x16xbf16>
    %c0_2 = arith.constant 0 : index
    %c0_3 = arith.constant 0 : index
    %2 = vector.load %arg1[%c0_2, %c0_3] : memref<16x512xbf16, #tpu.memory_space<vmem>>, vector<16x512xbf16>
    %cst = arith.constant dense<0.000000e+00> : vector<16x512xf32>
    %3 = tpu.matmul %1, %2, %cst {dimension_numbers = #tpu.dot_dimension_numbers<[1], [0], [0], [1], [0, 0, 1, 1], [], []>} : vector<16x16xbf16>, vector<16x512xbf16>, vector<16x512xf32> -> vector<16x512xf32>
    %4 = vector.shape_cast %3 : vector<16x512xf32> to vector<2x8x512xf32>
    %c0_4 = arith.constant 0 : index
    %c0_5 = arith.constant 0 : index
    %5 = vector.load %arg3[%c0_4, %c0_5] : memref<1x512xf32, #tpu.memory_space<vmem>>, vector<1x512xf32>
    %6 = vector.shape_cast %5 : vector<1x512xf32> to vector<1x1x512xf32>
    %7 = vector.broadcast %6 : vector<1x1x512xf32> to vector<2x8x512xf32>
    %8 = arith.addf %4, %7 : vector<2x8x512xf32>
    %c0_6 = arith.constant 0 : index
    %c0_7 = arith.constant 0 : index
    %9 = vector.load %arg2[%c0_6, %c0_7] : memref<128x512xbf16, #tpu.memory_space<vmem>>, vector<128x512xbf16>
    %cst_8 = arith.constant 0.000000e+00 : f32
    %10 = vector.broadcast %cst_8 : f32 to vector<2x128xf32>
    %cst_9 = arith.constant 0.000000e+00 : f32
    %11 = vector.broadcast %cst_9 : f32 to vector<2x128xf32>
    %12 = vector.extract_strided_slice %8 {offsets = [0, 0, 0], sizes = [2, 1, 512], strides = [1, 1, 1]} : vector<2x8x512xf32> to vector<2x1x512xf32>
    %13 = vector.shape_cast %12 : vector<2x1x512xf32> to vector<2x512xf32>
    %14 = arith.truncf %10 : vector<2x128xf32> to vector<2x128xbf16>
    %cst_10 = arith.constant dense<0.000000e+00> : vector<2x512xf32>
    %15 = tpu.matmul %14, %9, %cst_10 {dimension_numbers = #tpu.dot_dimension_numbers<[1], [0], [0], [1], [0, 0, 1, 1], [], []>} : vector<2x128xbf16>, vector<128x512xbf16>, vector<2x512xf32> -> vector<2x512xf32>
    %16 = arith.addf %13, %15 : vector<2x512xf32>
    %17 = vector.extract_strided_slice %16 {offsets = [0, 0], sizes = [2, 128], strides = [1, 1]} : vector<2x512xf32> to vector<2x128xf32>
    %18 = arith.negf %17 : vector<2x128xf32>
    %19 = math.exp %18 : vector<2x128xf32>
    %cst_11 = arith.constant 1.000000e+00 : f32
    %20 = vector.broadcast %cst_11 : f32 to vector<2x128xf32>
    %21 = arith.addf %20, %19 : vector<2x128xf32>
    %22 = arith.divf %20, %21 : vector<2x128xf32>
    %23 = vector.extract_strided_slice %16 {offsets = [0, 128], sizes = [2, 128], strides = [1, 1]} : vector<2x512xf32> to vector<2x128xf32>
    %24 = arith.negf %23 : vector<2x128xf32>
    %25 = math.exp %24 : vector<2x128xf32>
    %cst_12 = arith.constant 1.000000e+00 : f32
    %26 = vector.broadcast %cst_12 : f32 to vector<2x128xf32>
    %27 = arith.addf %26, %25 : vector<2x128xf32>
    %28 = arith.divf %26, %27 : vector<2x128xf32>
    %29 = vector.extract_strided_slice %16 {offsets = [0, 256], sizes = [2, 128], strides = [1, 1]} : vector<2x512xf32> to vector<2x128xf32>
    %30 = math.tanh %29 : vector<2x128xf32>
    %31 = vector.extract_strided_slice %16 {offsets = [0, 384], sizes = [2, 128], strides = [1, 1]} : vector<2x512xf32> to vector<2x128xf32>
    %32 = arith.negf %31 : vector<2x128xf32>
    %33 = math.exp %32 : vector<2x128xf32>
    %cst_13 = arith.constant 1.000000e+00 : f32
    %34 = vector.broadcast %cst_13 : f32 to vector<2x128xf32>
    %35 = arith.addf %34, %33 : vector<2x128xf32>
    %36 = arith.divf %34, %35 : vector<2x128xf32>
    %37 = arith.mulf %28, %11 : vector<2x128xf32>
    %38 = arith.mulf %22, %30 : vector<2x128xf32>
    %39 = arith.addf %37, %38 : vector<2x128xf32>
    %40 = math.tanh %39 : vector<2x128xf32>
    %41 = arith.mulf %36, %40 : vector<2x128xf32>
    %42 = vector.extract_strided_slice %8 {offsets = [0, 1, 0], sizes = [2, 1, 512], strides = [1, 1, 1]} : vector<2x8x512xf32> to vector<2x1x512xf32>
    %43 = vector.shape_cast %42 : vector<2x1x512xf32> to vector<2x512xf32>
    %44 = arith.truncf %41 : vector<2x128xf32> to vector<2x128xbf16>
    %cst_14 = arith.constant dense<0.000000e+00> : vector<2x512xf32>
    %45 = tpu.matmul %44, %9, %cst_14 {dimension_numbers = #tpu.dot_dimension_numbers<[1], [0], [0], [1], [0, 0, 1, 1], [], []>} : vector<2x128xbf16>, vector<128x512xbf16>, vector<2x512xf32> -> vector<2x512xf32>
    %46 = arith.addf %43, %45 : vector<2x512xf32>
    %47 = vector.extract_strided_slice %46 {offsets = [0, 0], sizes = [2, 128], strides = [1, 1]} : vector<2x512xf32> to vector<2x128xf32>
    %48 = arith.negf %47 : vector<2x128xf32>
    %49 = math.exp %48 : vector<2x128xf32>
    %cst_15 = arith.constant 1.000000e+00 : f32
    %50 = vector.broadcast %cst_15 : f32 to vector<2x128xf32>
    %51 = arith.addf %50, %49 : vector<2x128xf32>
    %52 = arith.divf %50, %51 : vector<2x128xf32>
    %53 = vector.extract_strided_slice %46 {offsets = [0, 128], sizes = [2, 128], strides = [1, 1]} : vector<2x512xf32> to vector<2x128xf32>
    %54 = arith.negf %53 : vector<2x128xf32>
    %55 = math.exp %54 : vector<2x128xf32>
    %cst_16 = arith.constant 1.000000e+00 : f32
    %56 = vector.broadcast %cst_16 : f32 to vector<2x128xf32>
    %57 = arith.addf %56, %55 : vector<2x128xf32>
    %58 = arith.divf %56, %57 : vector<2x128xf32>
    %59 = vector.extract_strided_slice %46 {offsets = [0, 256], sizes = [2, 128], strides = [1, 1]} : vector<2x512xf32> to vector<2x128xf32>
    %60 = math.tanh %59 : vector<2x128xf32>
    %61 = vector.extract_strided_slice %46 {offsets = [0, 384], sizes = [2, 128], strides = [1, 1]} : vector<2x512xf32> to vector<2x128xf32>
    %62 = arith.negf %61 : vector<2x128xf32>
    %63 = math.exp %62 : vector<2x128xf32>
    %cst_17 = arith.constant 1.000000e+00 : f32
    %64 = vector.broadcast %cst_17 : f32 to vector<2x128xf32>
    %65 = arith.addf %64, %63 : vector<2x128xf32>
    %66 = arith.divf %64, %65 : vector<2x128xf32>
    %67 = arith.mulf %58, %39 : vector<2x128xf32>
    %68 = arith.mulf %52, %60 : vector<2x128xf32>
    %69 = arith.addf %67, %68 : vector<2x128xf32>
    %70 = math.tanh %69 : vector<2x128xf32>
    %71 = arith.mulf %66, %70 : vector<2x128xf32>
    %72 = vector.extract_strided_slice %8 {offsets = [0, 2, 0], sizes = [2, 1, 512], strides = [1, 1, 1]} : vector<2x8x512xf32> to vector<2x1x512xf32>
    %73 = vector.shape_cast %72 : vector<2x1x512xf32> to vector<2x512xf32>
    %74 = arith.truncf %71 : vector<2x128xf32> to vector<2x128xbf16>
    %cst_18 = arith.constant dense<0.000000e+00> : vector<2x512xf32>
    %75 = tpu.matmul %74, %9, %cst_18 {dimension_numbers = #tpu.dot_dimension_numbers<[1], [0], [0], [1], [0, 0, 1, 1], [], []>} : vector<2x128xbf16>, vector<128x512xbf16>, vector<2x512xf32> -> vector<2x512xf32>
    %76 = arith.addf %73, %75 : vector<2x512xf32>
    %77 = vector.extract_strided_slice %76 {offsets = [0, 0], sizes = [2, 128], strides = [1, 1]} : vector<2x512xf32> to vector<2x128xf32>
    %78 = arith.negf %77 : vector<2x128xf32>
    %79 = math.exp %78 : vector<2x128xf32>
    %cst_19 = arith.constant 1.000000e+00 : f32
    %80 = vector.broadcast %cst_19 : f32 to vector<2x128xf32>
    %81 = arith.addf %80, %79 : vector<2x128xf32>
    %82 = arith.divf %80, %81 : vector<2x128xf32>
    %83 = vector.extract_strided_slice %76 {offsets = [0, 128], sizes = [2, 128], strides = [1, 1]} : vector<2x512xf32> to vector<2x128xf32>
    %84 = arith.negf %83 : vector<2x128xf32>
    %85 = math.exp %84 : vector<2x128xf32>
    %cst_20 = arith.constant 1.000000e+00 : f32
    %86 = vector.broadcast %cst_20 : f32 to vector<2x128xf32>
    %87 = arith.addf %86, %85 : vector<2x128xf32>
    %88 = arith.divf %86, %87 : vector<2x128xf32>
    %89 = vector.extract_strided_slice %76 {offsets = [0, 256], sizes = [2, 128], strides = [1, 1]} : vector<2x512xf32> to vector<2x128xf32>
    %90 = math.tanh %89 : vector<2x128xf32>
    %91 = vector.extract_strided_slice %76 {offsets = [0, 384], sizes = [2, 128], strides = [1, 1]} : vector<2x512xf32> to vector<2x128xf32>
    %92 = arith.negf %91 : vector<2x128xf32>
    %93 = math.exp %92 : vector<2x128xf32>
    %cst_21 = arith.constant 1.000000e+00 : f32
    %94 = vector.broadcast %cst_21 : f32 to vector<2x128xf32>
    %95 = arith.addf %94, %93 : vector<2x128xf32>
    %96 = arith.divf %94, %95 : vector<2x128xf32>
    %97 = arith.mulf %88, %69 : vector<2x128xf32>
    %98 = arith.mulf %82, %90 : vector<2x128xf32>
    %99 = arith.addf %97, %98 : vector<2x128xf32>
    %100 = math.tanh %99 : vector<2x128xf32>
    %101 = arith.mulf %96, %100 : vector<2x128xf32>
    %102 = vector.extract_strided_slice %8 {offsets = [0, 3, 0], sizes = [2, 1, 512], strides = [1, 1, 1]} : vector<2x8x512xf32> to vector<2x1x512xf32>
    %103 = vector.shape_cast %102 : vector<2x1x512xf32> to vector<2x512xf32>
    %104 = arith.truncf %101 : vector<2x128xf32> to vector<2x128xbf16>
    %cst_22 = arith.constant dense<0.000000e+00> : vector<2x512xf32>
    %105 = tpu.matmul %104, %9, %cst_22 {dimension_numbers = #tpu.dot_dimension_numbers<[1], [0], [0], [1], [0, 0, 1, 1], [], []>} : vector<2x128xbf16>, vector<128x512xbf16>, vector<2x512xf32> -> vector<2x512xf32>
    %106 = arith.addf %103, %105 : vector<2x512xf32>
    %107 = vector.extract_strided_slice %106 {offsets = [0, 0], sizes = [2, 128], strides = [1, 1]} : vector<2x512xf32> to vector<2x128xf32>
    %108 = arith.negf %107 : vector<2x128xf32>
    %109 = math.exp %108 : vector<2x128xf32>
    %cst_23 = arith.constant 1.000000e+00 : f32
    %110 = vector.broadcast %cst_23 : f32 to vector<2x128xf32>
    %111 = arith.addf %110, %109 : vector<2x128xf32>
    %112 = arith.divf %110, %111 : vector<2x128xf32>
    %113 = vector.extract_strided_slice %106 {offsets = [0, 128], sizes = [2, 128], strides = [1, 1]} : vector<2x512xf32> to vector<2x128xf32>
    %114 = arith.negf %113 : vector<2x128xf32>
    %115 = math.exp %114 : vector<2x128xf32>
    %cst_24 = arith.constant 1.000000e+00 : f32
    %116 = vector.broadcast %cst_24 : f32 to vector<2x128xf32>
    %117 = arith.addf %116, %115 : vector<2x128xf32>
    %118 = arith.divf %116, %117 : vector<2x128xf32>
    %119 = vector.extract_strided_slice %106 {offsets = [0, 256], sizes = [2, 128], strides = [1, 1]} : vector<2x512xf32> to vector<2x128xf32>
    %120 = math.tanh %119 : vector<2x128xf32>
    %121 = vector.extract_strided_slice %106 {offsets = [0, 384], sizes = [2, 128], strides = [1, 1]} : vector<2x512xf32> to vector<2x128xf32>
    %122 = arith.negf %121 : vector<2x128xf32>
    %123 = math.exp %122 : vector<2x128xf32>
    %cst_25 = arith.constant 1.000000e+00 : f32
    %124 = vector.broadcast %cst_25 : f32 to vector<2x128xf32>
    %125 = arith.addf %124, %123 : vector<2x128xf32>
    %126 = arith.divf %124, %125 : vector<2x128xf32>
    %127 = arith.mulf %118, %99 : vector<2x128xf32>
    %128 = arith.mulf %112, %120 : vector<2x128xf32>
    %129 = arith.addf %127, %128 : vector<2x128xf32>
    %130 = math.tanh %129 : vector<2x128xf32>
    %131 = arith.mulf %126, %130 : vector<2x128xf32>
    %132 = vector.extract_strided_slice %8 {offsets = [0, 4, 0], sizes = [2, 1, 512], strides = [1, 1, 1]} : vector<2x8x512xf32> to vector<2x1x512xf32>
    %133 = vector.shape_cast %132 : vector<2x1x512xf32> to vector<2x512xf32>
    %134 = arith.truncf %131 : vector<2x128xf32> to vector<2x128xbf16>
    %cst_26 = arith.constant dense<0.000000e+00> : vector<2x512xf32>
    %135 = tpu.matmul %134, %9, %cst_26 {dimension_numbers = #tpu.dot_dimension_numbers<[1], [0], [0], [1], [0, 0, 1, 1], [], []>} : vector<2x128xbf16>, vector<128x512xbf16>, vector<2x512xf32> -> vector<2x512xf32>
    %136 = arith.addf %133, %135 : vector<2x512xf32>
    %137 = vector.extract_strided_slice %136 {offsets = [0, 0], sizes = [2, 128], strides = [1, 1]} : vector<2x512xf32> to vector<2x128xf32>
    %138 = arith.negf %137 : vector<2x128xf32>
    %139 = math.exp %138 : vector<2x128xf32>
    %cst_27 = arith.constant 1.000000e+00 : f32
    %140 = vector.broadcast %cst_27 : f32 to vector<2x128xf32>
    %141 = arith.addf %140, %139 : vector<2x128xf32>
    %142 = arith.divf %140, %141 : vector<2x128xf32>
    %143 = vector.extract_strided_slice %136 {offsets = [0, 128], sizes = [2, 128], strides = [1, 1]} : vector<2x512xf32> to vector<2x128xf32>
    %144 = arith.negf %143 : vector<2x128xf32>
    %145 = math.exp %144 : vector<2x128xf32>
    %cst_28 = arith.constant 1.000000e+00 : f32
    %146 = vector.broadcast %cst_28 : f32 to vector<2x128xf32>
    %147 = arith.addf %146, %145 : vector<2x128xf32>
    %148 = arith.divf %146, %147 : vector<2x128xf32>
    %149 = vector.extract_strided_slice %136 {offsets = [0, 256], sizes = [2, 128], strides = [1, 1]} : vector<2x512xf32> to vector<2x128xf32>
    %150 = math.tanh %149 : vector<2x128xf32>
    %151 = vector.extract_strided_slice %136 {offsets = [0, 384], sizes = [2, 128], strides = [1, 1]} : vector<2x512xf32> to vector<2x128xf32>
    %152 = arith.negf %151 : vector<2x128xf32>
    %153 = math.exp %152 : vector<2x128xf32>
    %cst_29 = arith.constant 1.000000e+00 : f32
    %154 = vector.broadcast %cst_29 : f32 to vector<2x128xf32>
    %155 = arith.addf %154, %153 : vector<2x128xf32>
    %156 = arith.divf %154, %155 : vector<2x128xf32>
    %157 = arith.mulf %148, %129 : vector<2x128xf32>
    %158 = arith.mulf %142, %150 : vector<2x128xf32>
    %159 = arith.addf %157, %158 : vector<2x128xf32>
    %160 = math.tanh %159 : vector<2x128xf32>
    %161 = arith.mulf %156, %160 : vector<2x128xf32>
    %162 = vector.extract_strided_slice %8 {offsets = [0, 5, 0], sizes = [2, 1, 512], strides = [1, 1, 1]} : vector<2x8x512xf32> to vector<2x1x512xf32>
    %163 = vector.shape_cast %162 : vector<2x1x512xf32> to vector<2x512xf32>
    %164 = arith.truncf %161 : vector<2x128xf32> to vector<2x128xbf16>
    %cst_30 = arith.constant dense<0.000000e+00> : vector<2x512xf32>
    %165 = tpu.matmul %164, %9, %cst_30 {dimension_numbers = #tpu.dot_dimension_numbers<[1], [0], [0], [1], [0, 0, 1, 1], [], []>} : vector<2x128xbf16>, vector<128x512xbf16>, vector<2x512xf32> -> vector<2x512xf32>
    %166 = arith.addf %163, %165 : vector<2x512xf32>
    %167 = vector.extract_strided_slice %166 {offsets = [0, 0], sizes = [2, 128], strides = [1, 1]} : vector<2x512xf32> to vector<2x128xf32>
    %168 = arith.negf %167 : vector<2x128xf32>
    %169 = math.exp %168 : vector<2x128xf32>
    %cst_31 = arith.constant 1.000000e+00 : f32
    %170 = vector.broadcast %cst_31 : f32 to vector<2x128xf32>
    %171 = arith.addf %170, %169 : vector<2x128xf32>
    %172 = arith.divf %170, %171 : vector<2x128xf32>
    %173 = vector.extract_strided_slice %166 {offsets = [0, 128], sizes = [2, 128], strides = [1, 1]} : vector<2x512xf32> to vector<2x128xf32>
    %174 = arith.negf %173 : vector<2x128xf32>
    %175 = math.exp %174 : vector<2x128xf32>
    %cst_32 = arith.constant 1.000000e+00 : f32
    %176 = vector.broadcast %cst_32 : f32 to vector<2x128xf32>
    %177 = arith.addf %176, %175 : vector<2x128xf32>
    %178 = arith.divf %176, %177 : vector<2x128xf32>
    %179 = vector.extract_strided_slice %166 {offsets = [0, 256], sizes = [2, 128], strides = [1, 1]} : vector<2x512xf32> to vector<2x128xf32>
    %180 = math.tanh %179 : vector<2x128xf32>
    %181 = vector.extract_strided_slice %166 {offsets = [0, 384], sizes = [2, 128], strides = [1, 1]} : vector<2x512xf32> to vector<2x128xf32>
    %182 = arith.negf %181 : vector<2x128xf32>
    %183 = math.exp %182 : vector<2x128xf32>
    %cst_33 = arith.constant 1.000000e+00 : f32
    %184 = vector.broadcast %cst_33 : f32 to vector<2x128xf32>
    %185 = arith.addf %184, %183 : vector<2x128xf32>
    %186 = arith.divf %184, %185 : vector<2x128xf32>
    %187 = arith.mulf %178, %159 : vector<2x128xf32>
    %188 = arith.mulf %172, %180 : vector<2x128xf32>
    %189 = arith.addf %187, %188 : vector<2x128xf32>
    %190 = math.tanh %189 : vector<2x128xf32>
    %191 = arith.mulf %186, %190 : vector<2x128xf32>
    %192 = vector.extract_strided_slice %8 {offsets = [0, 6, 0], sizes = [2, 1, 512], strides = [1, 1, 1]} : vector<2x8x512xf32> to vector<2x1x512xf32>
    %193 = vector.shape_cast %192 : vector<2x1x512xf32> to vector<2x512xf32>
    %194 = arith.truncf %191 : vector<2x128xf32> to vector<2x128xbf16>
    %cst_34 = arith.constant dense<0.000000e+00> : vector<2x512xf32>
    %195 = tpu.matmul %194, %9, %cst_34 {dimension_numbers = #tpu.dot_dimension_numbers<[1], [0], [0], [1], [0, 0, 1, 1], [], []>} : vector<2x128xbf16>, vector<128x512xbf16>, vector<2x512xf32> -> vector<2x512xf32>
    %196 = arith.addf %193, %195 : vector<2x512xf32>
    %197 = vector.extract_strided_slice %196 {offsets = [0, 0], sizes = [2, 128], strides = [1, 1]} : vector<2x512xf32> to vector<2x128xf32>
    %198 = arith.negf %197 : vector<2x128xf32>
    %199 = math.exp %198 : vector<2x128xf32>
    %cst_35 = arith.constant 1.000000e+00 : f32
    %200 = vector.broadcast %cst_35 : f32 to vector<2x128xf32>
    %201 = arith.addf %200, %199 : vector<2x128xf32>
    %202 = arith.divf %200, %201 : vector<2x128xf32>
    %203 = vector.extract_strided_slice %196 {offsets = [0, 128], sizes = [2, 128], strides = [1, 1]} : vector<2x512xf32> to vector<2x128xf32>
    %204 = arith.negf %203 : vector<2x128xf32>
    %205 = math.exp %204 : vector<2x128xf32>
    %cst_36 = arith.constant 1.000000e+00 : f32
    %206 = vector.broadcast %cst_36 : f32 to vector<2x128xf32>
    %207 = arith.addf %206, %205 : vector<2x128xf32>
    %208 = arith.divf %206, %207 : vector<2x128xf32>
    %209 = vector.extract_strided_slice %196 {offsets = [0, 256], sizes = [2, 128], strides = [1, 1]} : vector<2x512xf32> to vector<2x128xf32>
    %210 = math.tanh %209 : vector<2x128xf32>
    %211 = vector.extract_strided_slice %196 {offsets = [0, 384], sizes = [2, 128], strides = [1, 1]} : vector<2x512xf32> to vector<2x128xf32>
    %212 = arith.negf %211 : vector<2x128xf32>
    %213 = math.exp %212 : vector<2x128xf32>
    %cst_37 = arith.constant 1.000000e+00 : f32
    %214 = vector.broadcast %cst_37 : f32 to vector<2x128xf32>
    %215 = arith.addf %214, %213 : vector<2x128xf32>
    %216 = arith.divf %214, %215 : vector<2x128xf32>
    %217 = arith.mulf %208, %189 : vector<2x128xf32>
    %218 = arith.mulf %202, %210 : vector<2x128xf32>
    %219 = arith.addf %217, %218 : vector<2x128xf32>
    %220 = math.tanh %219 : vector<2x128xf32>
    %221 = arith.mulf %216, %220 : vector<2x128xf32>
    %222 = vector.extract_strided_slice %8 {offsets = [0, 7, 0], sizes = [2, 1, 512], strides = [1, 1, 1]} : vector<2x8x512xf32> to vector<2x1x512xf32>
    %223 = vector.shape_cast %222 : vector<2x1x512xf32> to vector<2x512xf32>
    %224 = arith.truncf %221 : vector<2x128xf32> to vector<2x128xbf16>
    %cst_38 = arith.constant dense<0.000000e+00> : vector<2x512xf32>
    %225 = tpu.matmul %224, %9, %cst_38 {dimension_numbers = #tpu.dot_dimension_numbers<[1], [0], [0], [1], [0, 0, 1, 1], [], []>} : vector<2x128xbf16>, vector<128x512xbf16>, vector<2x512xf32> -> vector<2x512xf32>
    %226 = arith.addf %223, %225 : vector<2x512xf32>
    %227 = vector.extract_strided_slice %226 {offsets = [0, 0], sizes = [2, 128], strides = [1, 1]} : vector<2x512xf32> to vector<2x128xf32>
    %228 = arith.negf %227 : vector<2x128xf32>
    %229 = math.exp %228 : vector<2x128xf32>
    %cst_39 = arith.constant 1.000000e+00 : f32
    %230 = vector.broadcast %cst_39 : f32 to vector<2x128xf32>
    %231 = arith.addf %230, %229 : vector<2x128xf32>
    %232 = arith.divf %230, %231 : vector<2x128xf32>
    %233 = vector.extract_strided_slice %226 {offsets = [0, 128], sizes = [2, 128], strides = [1, 1]} : vector<2x512xf32> to vector<2x128xf32>
    %234 = arith.negf %233 : vector<2x128xf32>
    %235 = math.exp %234 : vector<2x128xf32>
    %cst_40 = arith.constant 1.000000e+00 : f32
    %236 = vector.broadcast %cst_40 : f32 to vector<2x128xf32>
    %237 = arith.addf %236, %235 : vector<2x128xf32>
    %238 = arith.divf %236, %237 : vector<2x128xf32>
    %239 = vector.extract_strided_slice %226 {offsets = [0, 256], sizes = [2, 128], strides = [1, 1]} : vector<2x512xf32> to vector<2x128xf32>
    %240 = math.tanh %239 : vector<2x128xf32>
    %241 = vector.extract_strided_slice %226 {offsets = [0, 384], sizes = [2, 128], strides = [1, 1]} : vector<2x512xf32> to vector<2x128xf32>
    %242 = arith.negf %241 : vector<2x128xf32>
    %243 = math.exp %242 : vector<2x128xf32>
    %cst_41 = arith.constant 1.000000e+00 : f32
    %244 = vector.broadcast %cst_41 : f32 to vector<2x128xf32>
    %245 = arith.addf %244, %243 : vector<2x128xf32>
    %246 = arith.divf %244, %245 : vector<2x128xf32>
    %247 = arith.mulf %238, %219 : vector<2x128xf32>
    %248 = arith.mulf %232, %240 : vector<2x128xf32>
    %249 = arith.addf %247, %248 : vector<2x128xf32>
    %250 = math.tanh %249 : vector<2x128xf32>
    %251 = arith.mulf %246, %250 : vector<2x128xf32>
    %c0_42 = arith.constant 0 : index
    %c0_43 = arith.constant 0 : index
    %252 = vector.load %arg6[%c0_42, %c0_43] : memref<1x128xf32, #tpu.memory_space<vmem>>, vector<1x128xf32>
    %253 = vector.broadcast %252 : vector<1x128xf32> to vector<2x128xf32>
    %254 = arith.subf %251, %253 : vector<2x128xf32>
    %c0_44 = arith.constant 0 : index
    %c0_45 = arith.constant 0 : index
    %255 = vector.load %arg7[%c0_44, %c0_45] : memref<1x128xf32, #tpu.memory_space<vmem>>, vector<1x128xf32>
    %cst_46 = arith.constant 9.99999974E-6 : f32
    %256 = vector.broadcast %cst_46 : f32 to vector<1x128xf32>
    %257 = arith.addf %255, %256 : vector<1x128xf32>
    %258 = math.rsqrt %257 : vector<1x128xf32>
    %259 = vector.broadcast %258 : vector<1x128xf32> to vector<2x128xf32>
    %260 = arith.mulf %254, %259 : vector<2x128xf32>
    %c0_47 = arith.constant 0 : index
    %c0_48 = arith.constant 0 : index
    %261 = vector.load %arg4[%c0_47, %c0_48] : memref<1x128xf32, #tpu.memory_space<vmem>>, vector<1x128xf32>
    %262 = vector.broadcast %261 : vector<1x128xf32> to vector<2x128xf32>
    %263 = arith.mulf %260, %262 : vector<2x128xf32>
    %c0_49 = arith.constant 0 : index
    %c0_50 = arith.constant 0 : index
    %264 = vector.load %arg5[%c0_49, %c0_50] : memref<1x128xf32, #tpu.memory_space<vmem>>, vector<1x128xf32>
    %265 = vector.broadcast %264 : vector<1x128xf32> to vector<2x128xf32>
    %266 = arith.addf %263, %265 : vector<2x128xf32>
    %267 = arith.truncf %266 : vector<2x128xf32> to vector<2x128xbf16>
    %c0_51 = arith.constant 0 : index
    %c0_52 = arith.constant 0 : index
    %268 = vector.load %arg8[%c0_51, %c0_52] : memref<128x512xbf16, #tpu.memory_space<vmem>>, vector<128x512xbf16>
    %cst_53 = arith.constant dense<0.000000e+00> : vector<2x512xf32>
    %269 = tpu.matmul %267, %268, %cst_53 {dimension_numbers = #tpu.dot_dimension_numbers<[1], [0], [0], [1], [0, 0, 1, 1], [], []>} : vector<2x128xbf16>, vector<128x512xbf16>, vector<2x512xf32> -> vector<2x512xf32>
    %c0_54 = arith.constant 0 : index
    %c0_55 = arith.constant 0 : index
    %270 = vector.load %arg9[%c0_54, %c0_55] : memref<1x512xf32, #tpu.memory_space<vmem>>, vector<1x512xf32>
    %271 = vector.broadcast %270 : vector<1x512xf32> to vector<2x512xf32>
    %272 = arith.addf %269, %271 : vector<2x512xf32>
    %273 = vector.extract_strided_slice %272 {offsets = [0, 0], sizes = [2, 128], strides = [1, 1]} : vector<2x512xf32> to vector<2x128xf32>
    %274 = arith.negf %273 : vector<2x128xf32>
    %275 = math.exp %274 : vector<2x128xf32>
    %cst_56 = arith.constant 1.000000e+00 : f32
    %276 = vector.broadcast %cst_56 : f32 to vector<2x128xf32>
    %277 = arith.addf %276, %275 : vector<2x128xf32>
    %278 = arith.divf %276, %277 : vector<2x128xf32>
    %279 = vector.extract_strided_slice %272 {offsets = [0, 256], sizes = [2, 128], strides = [1, 1]} : vector<2x512xf32> to vector<2x128xf32>
    %280 = math.tanh %279 : vector<2x128xf32>
    %281 = vector.extract_strided_slice %272 {offsets = [0, 384], sizes = [2, 128], strides = [1, 1]} : vector<2x512xf32> to vector<2x128xf32>
    %282 = arith.negf %281 : vector<2x128xf32>
    %283 = math.exp %282 : vector<2x128xf32>
    %cst_57 = arith.constant 1.000000e+00 : f32
    %284 = vector.broadcast %cst_57 : f32 to vector<2x128xf32>
    %285 = arith.addf %284, %283 : vector<2x128xf32>
    %286 = arith.divf %284, %285 : vector<2x128xf32>
    %287 = arith.mulf %278, %280 : vector<2x128xf32>
    %288 = math.tanh %287 : vector<2x128xf32>
    %289 = arith.mulf %286, %288 : vector<2x128xf32>
    %c0_58 = arith.constant 0 : index
    %c0_59 = arith.constant 0 : index
    %290 = vector.load %arg12[%c0_58, %c0_59] : memref<1x128xf32, #tpu.memory_space<vmem>>, vector<1x128xf32>
    %291 = vector.broadcast %290 : vector<1x128xf32> to vector<2x128xf32>
    %292 = arith.subf %289, %291 : vector<2x128xf32>
    %c0_60 = arith.constant 0 : index
    %c0_61 = arith.constant 0 : index
    %293 = vector.load %arg13[%c0_60, %c0_61] : memref<1x128xf32, #tpu.memory_space<vmem>>, vector<1x128xf32>
    %cst_62 = arith.constant 9.99999974E-6 : f32
    %294 = vector.broadcast %cst_62 : f32 to vector<1x128xf32>
    %295 = arith.addf %293, %294 : vector<1x128xf32>
    %296 = math.rsqrt %295 : vector<1x128xf32>
    %297 = vector.broadcast %296 : vector<1x128xf32> to vector<2x128xf32>
    %298 = arith.mulf %292, %297 : vector<2x128xf32>
    %c0_63 = arith.constant 0 : index
    %c0_64 = arith.constant 0 : index
    %299 = vector.load %arg10[%c0_63, %c0_64] : memref<1x128xf32, #tpu.memory_space<vmem>>, vector<1x128xf32>
    %300 = vector.broadcast %299 : vector<1x128xf32> to vector<2x128xf32>
    %301 = arith.mulf %298, %300 : vector<2x128xf32>
    %c0_65 = arith.constant 0 : index
    %c0_66 = arith.constant 0 : index
    %302 = vector.load %arg11[%c0_65, %c0_66] : memref<1x128xf32, #tpu.memory_space<vmem>>, vector<1x128xf32>
    %303 = vector.broadcast %302 : vector<1x128xf32> to vector<2x128xf32>
    %304 = arith.addf %301, %303 : vector<2x128xf32>
    %305 = arith.truncf %304 : vector<2x128xf32> to vector<2x128xbf16>
    %c0_67 = arith.constant 0 : index
    %c0_68 = arith.constant 0 : index
    %306 = vector.load %arg14[%c0_67, %c0_68] : memref<128x2xbf16, #tpu.memory_space<vmem>>, vector<128x2xbf16>
    %cst_69 = arith.constant dense<0.000000e+00> : vector<2x2xf32>
    %307 = tpu.matmul %305, %306, %cst_69 {dimension_numbers = #tpu.dot_dimension_numbers<[1], [0], [0], [1], [0, 0, 1, 1], [], []>} : vector<2x128xbf16>, vector<128x2xbf16>, vector<2x2xf32> -> vector<2x2xf32>
    %c0_70 = arith.constant 0 : index
    %c0_71 = arith.constant 0 : index
    %308 = vector.load %arg15[%c0_70, %c0_71] : memref<1x2xf32, #tpu.memory_space<vmem>>, vector<1x2xf32>
    %309 = vector.broadcast %308 : vector<1x2xf32> to vector<2x2xf32>
    %310 = arith.addf %307, %309 : vector<2x2xf32>
    %c0_72 = arith.constant 0 : index
    %c0_73 = arith.constant 0 : index
    %311 = vector.load %arg16[%c0_72, %c0_73] : memref<2x2xf32, #tpu.memory_space<vmem>>, vector<2x2xf32>
    tpu.vector_store %arg16[%c0_72, %c0_73], %310 {strides = array<i32>} : memref<2x2xf32, #tpu.memory_space<vmem>>, vector<2x2xf32>,
    return
  }
}

</mosaic_0001>

<llo_original>
// kernel: simple_lstm_forward.1
$region0: #{simple_lstm_forward.1}
  #allocation0 [shape = 'u32[]', space=smem, size = 0x4, offset = 0x4, fixed_abs, tag = 'smem constant byte address 0x4 - core index']
  #allocation1 [shape = 'u32[144,128]{1,0:T(1,128)}', space=vmem, size = 0x12000, scoped, tag = 'internal scratch']
  %s0 = inlined_call_operand.vmem [shape: bf16[2,8,16], index: 0, kind: input, shape index: {}]
  %s1 = inlined_call_operand.vmem [shape: bf16[16,512], index: 1, kind: input, shape index: {}]
  %s2 = inlined_call_operand.vmem [shape: bf16[128,512], index: 2, kind: input, shape index: {}]
  %s3 = inlined_call_operand.vmem [shape: f32[1,512], index: 3, kind: input, shape index: {}]
  %s4 = inlined_call_operand.vmem [shape: f32[1,128], index: 4, kind: input, shape index: {}]
  %s5 = inlined_call_operand.vmem [shape: f32[1,128], index: 5, kind: input, shape index: {}]
  %s6 = inlined_call_operand.vmem [shape: f32[1,128], index: 6, kind: input, shape index: {}]
  %s7 = inlined_call_operand.vmem [shape: f32[1,128], index: 7, kind: input, shape index: {}]
  %s8 = inlined_call_operand.vmem [shape: bf16[128,512], index: 8, kind: input, shape index: {}]
  %s9 = inlined_call_operand.vmem [shape: f32[1,512], index: 9, kind: input, shape index: {}]
  %s10 = inlined_call_operand.vmem [shape: f32[1,128], index: 10, kind: input, shape index: {}]
  %s11 = inlined_call_operand.vmem [shape: f32[1,128], index: 11, kind: input, shape index: {}]
  %s12 = inlined_call_operand.vmem [shape: f32[1,128], index: 12, kind: input, shape index: {}]
  %s13 = inlined_call_operand.vmem [shape: f32[1,128], index: 13, kind: input, shape index: {}]
  %s14 = inlined_call_operand.vmem [shape: bf16[128,2], index: 14, kind: input, shape index: {}]
  %s15 = inlined_call_operand.vmem [shape: f32[1,2], index: 15, kind: input, shape index: {}]
  %s16 = inlined_call_operand.hbm [shape: f32[2,2], index: 16, kind: output, shape index: {}]
  %s17 = sld [smem:[#allocation0]]
  $region74: #{simple_lstm_forward.1} parent=0
    _
  %s19 = ssub.s32 1, %s17
  %s20 = scalar_select 0, %s19, %s17
  $region1: #{simple_lstm_forward.1} parent=0
    #allocation2 [shape = 'u8[1024]{0}', space=vmem, size = 0x400, scoped, tag = 'output window, operand 0, single buffered']
    #allocation3 [shape = 's32[1]{0}', space=sflag, size = 0x4, scoped, tag = 'scoped memory for simple_lstm_forward.1']
    %21 = vsyncpa [#allocation3], 0
    // Predicated region
    $region2: #{simple_lstm_forward.1} parent=1 // pred_check
      _
    $region3: #{simple_lstm_forward.1} parent=1 // pred_check_branch
      %23 = sbr.rel (0) target = $region5
    $region4: #{simple_lstm_forward.1} parent=1 // pred_region
      _
    $region5: #{simple_lstm_forward.1} parent=1 // pred_fallthru
      _
    // Predicated region
    $region6: #{simple_lstm_forward.1} parent=1 // pred_check
      _
    $region7: #{simple_lstm_forward.1} parent=1 // pred_check_branch
      %25 = sbr.rel (0) target = $region9
    $region8: #{simple_lstm_forward.1} parent=1 // pred_region
      _
    $region9: #{simple_lstm_forward.1} parent=1 // pred_fallthru
      _
    // Predicated region
    $region10: #{simple_lstm_forward.1} parent=1 // pred_check
      _
    $region11: #{simple_lstm_forward.1} parent=1 // pred_check_branch
      %27 = sbr.rel (0) target = $region13
    $region12: #{simple_lstm_forward.1} parent=1 // pred_region
      _
    $region13: #{simple_lstm_forward.1} parent=1 // pred_fallthru
      _
    // Predicated region
    $region14: #{simple_lstm_forward.1} parent=1 // pred_check
      _
    $region15: #{simple_lstm_forward.1} parent=1 // pred_check_branch
      %29 = sbr.rel (0) target = $region17
    $region16: #{simple_lstm_forward.1} parent=1 // pred_region
      _
    $region17: #{simple_lstm_forward.1} parent=1 // pred_fallthru
      _
    // Predicated region
    $region18: #{simple_lstm_forward.1} parent=1 // pred_check
      _
    $region19: #{simple_lstm_forward.1} parent=1 // pred_check_branch
      %31 = sbr.rel (0) target = $region21
    $region20: #{simple_lstm_forward.1} parent=1 // pred_region
      _
    $region21: #{simple_lstm_forward.1} parent=1 // pred_fallthru
      _
    // Predicated region
    $region22: #{simple_lstm_forward.1} parent=1 // pred_check
      _
    $region23: #{simple_lstm_forward.1} parent=1 // pred_check_branch
      %33 = sbr.rel (0) target = $region25
    $region24: #{simple_lstm_forward.1} parent=1 // pred_region
      _
    $region25: #{simple_lstm_forward.1} parent=1 // pred_fallthru
      _
    // Predicated region
    $region26: #{simple_lstm_forward.1} parent=1 // pred_check
      _
    $region27: #{simple_lstm_forward.1} parent=1 // pred_check_branch
      %35 = sbr.rel (0) target = $region29
    $region28: #{simple_lstm_forward.1} parent=1 // pred_region
      _
    $region29: #{simple_lstm_forward.1} parent=1 // pred_fallthru
      _
    // Predicated region
    $region30: #{simple_lstm_forward.1} parent=1 // pred_check
      _
    $region31: #{simple_lstm_forward.1} parent=1 // pred_check_branch
      %37 = sbr.rel (0) target = $region33
    $region32: #{simple_lstm_forward.1} parent=1 // pred_region
      _
    $region33: #{simple_lstm_forward.1} parent=1 // pred_fallthru
      _
    // Predicated region
    $region34: #{simple_lstm_forward.1} parent=1 // pred_check
      _
    $region35: #{simple_lstm_forward.1} parent=1 // pred_check_branch
      %39 = sbr.rel (0) target = $region37
    $region36: #{simple_lstm_forward.1} parent=1 // pred_region
      _
    $region37: #{simple_lstm_forward.1} parent=1 // pred_fallthru
      _
    // Predicated region
    $region38: #{simple_lstm_forward.1} parent=1 // pred_check
      _
    $region39: #{simple_lstm_forward.1} parent=1 // pred_check_branch
      %41 = sbr.rel (0) target = $region41
    $region40: #{simple_lstm_forward.1} parent=1 // pred_region
      _
    $region41: #{simple_lstm_forward.1} parent=1 // pred_fallthru
      _
    // Predicated region
    $region42: #{simple_lstm_forward.1} parent=1 // pred_check
      _
    $region43: #{simple_lstm_forward.1} parent=1 // pred_check_branch
      %43 = sbr.rel (0) target = $region45
    $region44: #{simple_lstm_forward.1} parent=1 // pred_region
      _
    $region45: #{simple_lstm_forward.1} parent=1 // pred_fallthru
      _
    // Predicated region
    $region46: #{simple_lstm_forward.1} parent=1 // pred_check
      _
    $region47: #{simple_lstm_forward.1} parent=1 // pred_check_branch
      %45 = sbr.rel (0) target = $region49
    $region48: #{simple_lstm_forward.1} parent=1 // pred_region
      _
    $region49: #{simple_lstm_forward.1} parent=1 // pred_fallthru
      _
    // Predicated region
    $region50: #{simple_lstm_forward.1} parent=1 // pred_check
      _
    $region51: #{simple_lstm_forward.1} parent=1 // pred_check_branch
      %47 = sbr.rel (0) target = $region53
    $region52: #{simple_lstm_forward.1} parent=1 // pred_region
      _
    $region53: #{simple_lstm_forward.1} parent=1 // pred_fallthru
      _
    // Predicated region
    $region54: #{simple_lstm_forward.1} parent=1 // pred_check
      _
    $region55: #{simple_lstm_forward.1} parent=1 // pred_check_branch
      %49 = sbr.rel (0) target = $region57
    $region56: #{simple_lstm_forward.1} parent=1 // pred_region
      _
    $region57: #{simple_lstm_forward.1} parent=1 // pred_fallthru
      _
    // Predicated region
    $region58: #{simple_lstm_forward.1} parent=1 // pred_check
      _
    $region59: #{simple_lstm_forward.1} parent=1 // pred_check_branch
      %51 = sbr.rel (0) target = $region61
    $region60: #{simple_lstm_forward.1} parent=1 // pred_region
      _
    $region61: #{simple_lstm_forward.1} parent=1 // pred_fallthru
      _
    // Predicated region
    $region62: #{simple_lstm_forward.1} parent=1 // pred_check
      _
    $region63: #{simple_lstm_forward.1} parent=1 // pred_check_branch
      %53 = sbr.rel (0) target = $region65
    $region64: #{simple_lstm_forward.1} parent=1 // pred_region
      _
    $region65: #{simple_lstm_forward.1} parent=1 // pred_fallthru
      _
    %v55 = vld [vmem:[%s0] sm:$0xf]
    %v56 = vld [vmem:[%s0 + $0x4] sm:$0xf]
    %v57 = vld [vmem:[%s1] sm:$0xff]
    %v58 = vld [vmem:[%s1 + $0x8] sm:$0xff]
    %v59 = vld [vmem:[%s1 + $0x10] sm:$0xff]
    %v60 = vld [vmem:[%s1 + $0x18] sm:$0xff]
    %v63 = vunpack.c.l.b16 %v55
    %v64 = vunpack.c.l.b16 %v56
    %v65 = vpack.c.b16 %v64, %v63
    %v70 = vunpack.c.l.b16 %v57
    %v71 = vunpack.c.h.b16 %v57
    %v72 = vunpack.c.l.b16 %v58
    %v73 = vunpack.c.h.b16 %v58
    %v74 = vunpack.c.l.b16 %v59
    %v75 = vunpack.c.h.b16 %v59
    %v76 = vunpack.c.l.b16 %v60
    %v77 = vunpack.c.h.b16 %v60
    %v78 = vpack.c.b16 %v74, %v70
    %v79 = vpack.c.b16 %v75, %v71
    %v80 = vpack.c.b16 %v76, %v72
    %v81 = vpack.c.b16 %v77, %v73
    %vm86 = vcmask 130048
    %v88 = vsel %vm86, %v65, 0
    %90 = vmatprep.subr.bf16.mxu0 %v79
    %91 = vmatpush1.bf16.msra.mxu0 %v78
    %92 = vmatprep.subr.bf16.mxu0 0
    %93 = vmatpush1.bf16.msra.mxu0 0
    %94 = vmatprep.subr.bf16.mxu0 0
    %95 = vmatpush1.bf16.msra.mxu0 0
    %96 = vmatprep.subr.bf16.mxu0 0
    %97 = vmatpush1.bf16.msra.mxu0 0
    %98 = vmatprep.subr.bf16.mxu0 0
    %99 = vmatpush1.bf16.msra.mxu0 0
    %100 = vmatprep.subr.bf16.mxu0 0
    %101 = vmatpush1.bf16.msra.mxu0 0
    %102 = vmatprep.subr.bf16.mxu0 0
    %103 = vmatpush1.bf16.msra.mxu0 0
    %104 = vmatprep.subr.bf16.mxu0 0
    %105 = vmatpush1.bf16.msra.mxu0 0
    %106 = vmatprep.subr.bf16.mxu0 0
    %107 = vmatpush1.bf16.msra.mxu0 0
    %108 = vmatprep.subr.bf16.mxu0 0
    %109 = vmatpush1.bf16.msra.mxu0 0
    %110 = vmatprep.subr.bf16.mxu0 0
    %111 = vmatpush1.bf16.msra.mxu0 0
    %112 = vmatprep.subr.bf16.mxu0 0
    %113 = vmatpush1.bf16.msra.mxu0 0
    %114 = vmatprep.subr.bf16.mxu0 0
    %115 = vmatpush1.bf16.msra.mxu0 0
    %116 = vmatprep.subr.bf16.mxu0 0
    %117 = vmatpush1.bf16.msra.mxu0 0
    %118 = vmatprep.subr.bf16.mxu0 0
    %119 = vmatpush1.bf16.msra.mxu0 0
    %120 = vmatprep.subr.bf16.mxu0 0
    %121 = vmatpush1.bf16.msra.mxu0 0
    %122 = vmatprep.mubr.bf16.mxu0 0
    %123 = vmatmul.mubr.bf16.gmra.mrb[0].mxu0 %v88
    %v124 = vpop.f32.mrb[0].mxu0
    %v125 = vadd.f32 0.0, %v124
    %v126 = vpop.f32.mrb[0].mxu0
    %v127 = vadd.f32 0.0, %v126
    %v128 = vpop.f32.mrb[0].mxu0
    %v129 = vadd.f32 0.0, %v128
    %v130 = vpop.f32.mrb[0].mxu0
    %v131 = vadd.f32 0.0, %v130
    %132 = vdwg.mxu0
    %133 = vmatprep.subr.bf16.mxu0 %v81
    %134 = vmatpush1.bf16.msra.mxu0 %v80
    %135 = vmatprep.subr.bf16.mxu0 0
    %136 = vmatpush1.bf16.msra.mxu0 0
    %137 = vmatprep.subr.bf16.mxu0 0
    %138 = vmatpush1.bf16.msra.mxu0 0
    %139 = vmatprep.subr.bf16.mxu0 0
    %140 = vmatpush1.bf16.msra.mxu0 0
    %141 = vmatprep.subr.bf16.mxu0 0
    %142 = vmatpush1.bf16.msra.mxu0 0
    %143 = vmatprep.subr.bf16.mxu0 0
    %144 = vmatpush1.bf16.msra.mxu0 0
    %145 = vmatprep.subr.bf16.mxu0 0
    %146 = vmatpush1.bf16.msra.mxu0 0
    %147 = vmatprep.subr.bf16.mxu0 0
    %148 = vmatpush1.bf16.msra.mxu0 0
    %149 = vmatprep.subr.bf16.mxu0 0
    %150 = vmatpush1.bf16.msra.mxu0 0
    %151 = vmatprep.subr.bf16.mxu0 0
    %152 = vmatpush1.bf16.msra.mxu0 0
    %153 = vmatprep.subr.bf16.mxu0 0
    %154 = vmatpush1.bf16.msra.mxu0 0
    %155 = vmatprep.subr.bf16.mxu0 0
    %156 = vmatpush1.bf16.msra.mxu0 0
    %157 = vmatprep.subr.bf16.mxu0 0
    %158 = vmatpush1.bf16.msra.mxu0 0
    %159 = vmatprep.subr.bf16.mxu0 0
    %160 = vmatpush1.bf16.msra.mxu0 0
    %161 = vmatprep.subr.bf16.mxu0 0
    %162 = vmatpush1.bf16.msra.mxu0 0
    %163 = vmatprep.subr.bf16.mxu0 0
    %164 = vmatpush1.bf16.msra.mxu0 0
    %165 = vmatprep.mubr.bf16.mxu0 0
    %166 = vmatmul.mubr.bf16.gmra.mrb[0].mxu0 %v88
    %v167 = vpop.f32.mrb[0].mxu0
    %v168 = vadd.f32 0.0, %v167
    %v169 = vpop.f32.mrb[0].mxu0
    %v170 = vadd.f32 0.0, %v169
    %v171 = vpop.f32.mrb[0].mxu0
    %v172 = vadd.f32 0.0, %v171
    %v173 = vpop.f32.mrb[0].mxu0
    %v174 = vadd.f32 0.0, %v173
    %175 = vdwg.mxu0
    %v176 = vld [vmem:[%s3] sm:$0xf]
    %v178 = vlaneseq
    %v179 = vshrl.u32 %v178, 7
    %v180 = vsub.s32 0, %v179
    %v181 = vrot.slane %v176, %v180
    %v182 = vlaneseq
    %v183 = vshrl.u32 %v182, 7
    %v184 = vsub.s32 1, %v183
    %v185 = vrot.slane %v176, %v184
    %v186 = vlaneseq
    %v187 = vshrl.u32 %v186, 7
    %v188 = vsub.s32 2, %v187
    %v189 = vrot.slane %v176, %v188
    %v190 = vlaneseq
    %v191 = vshrl.u32 %v190, 7
    %v192 = vsub.s32 3, %v191
    %v193 = vrot.slane %v176, %v192
    %v198 = vadd.f32 %v125, %v181
    %v199 = vadd.f32 %v127, %v185
    %v200 = vadd.f32 %v168, %v189
    %v201 = vadd.f32 %v170, %v193
    %v202 = vadd.f32 %v129, %v181
    %v203 = vadd.f32 %v131, %v185
    %v204 = vadd.f32 %v172, %v189
    %v205 = vadd.f32 %v174, %v193
    %v206 = vld [vmem:[%s2] sm:$0xff]
    %v207 = vld [vmem:[%s2 + $0x8] sm:$0xff]
    %v208 = vld [vmem:[%s2 + $0x10] sm:$0xff]
    %v209 = vld [vmem:[%s2 + $0x18] sm:$0xff]
    %v210 = vld [vmem:[%s2 + $0x20] sm:$0xff]
    %v211 = vld [vmem:[%s2 + $0x28] sm:$0xff]
    %v212 = vld [vmem:[%s2 + $0x30] sm:$0xff]
    %v213 = vld [vmem:[%s2 + $0x38] sm:$0xff]
    %v214 = vld [vmem:[%s2 + $0x40] sm:$0xff]
    %v215 = vld [vmem:[%s2 + $0x48] sm:$0xff]
    %v216 = vld [vmem:[%s2 + $0x50] sm:$0xff]
    %v217 = vld [vmem:[%s2 + $0x58] sm:$0xff]
    %v218 = vld [vmem:[%s2 + $0x60] sm:$0xff]
    %v219 = vld [vmem:[%s2 + $0x68] sm:$0xff]
    %v220 = vld [vmem:[%s2 + $0x70] sm:$0xff]
    %v221 = vld [vmem:[%s2 + $0x78] sm:$0xff]
    %v222 = vld [vmem:[%s2 + $0x80] sm:$0xff]
    %v223 = vld [vmem:[%s2 + $0x88] sm:$0xff]
    %v224 = vld [vmem:[%s2 + $0x90] sm:$0xff]
    %v225 = vld [vmem:[%s2 + $0x98] sm:$0xff]
    %v226 = vld [vmem:[%s2 + $0xa0] sm:$0xff]
    %v227 = vld [vmem:[%s2 + $0xa8] sm:$0xff]
    %v228 = vld [vmem:[%s2 + $0xb0] sm:$0xff]
    %v229 = vld [vmem:[%s2 + $0xb8] sm:$0xff]
    %v230 = vld [vmem:[%s2 + $0xc0] sm:$0xff]
    %v231 = vld [vmem:[%s2 + $0xc8] sm:$0xff]
    %v232 = vld [vmem:[%s2 + $0xd0] sm:$0xff]
    %v233 = vld [vmem:[%s2 + $0xd8] sm:$0xff]
    %v234 = vld [vmem:[%s2 + $0xe0] sm:$0xff]
    %v235 = vld [vmem:[%s2 + $0xe8] sm:$0xff]
    %v236 = vld [vmem:[%s2 + $0xf0] sm:$0xff]
    %v237 = vld [vmem:[%s2 + $0xf8] sm:$0xff]
    %v270 = vunpack.c.l.b16 %v206
    %v271 = vunpack.c.h.b16 %v206
    %v272 = vunpack.c.l.b16 %v207
    %v273 = vunpack.c.h.b16 %v207
    %v274 = vunpack.c.l.b16 %v208
    %v275 = vunpack.c.h.b16 %v208
    %v276 = vunpack.c.l.b16 %v209
    %v277 = vunpack.c.h.b16 %v209
    %v278 = vunpack.c.l.b16 %v210
    %v279 = vunpack.c.h.b16 %v210
    %v280 = vunpack.c.l.b16 %v211
    %v281 = vunpack.c.h.b16 %v211
    %v282 = vunpack.c.l.b16 %v212
    %v283 = vunpack.c.h.b16 %v212
    %v284 = vunpack.c.l.b16 %v213
    %v285 = vunpack.c.h.b16 %v213
    %v286 = vunpack.c.l.b16 %v214
    %v287 = vunpack.c.h.b16 %v214
    %v288 = vunpack.c.l.b16 %v215
    %v289 = vunpack.c.h.b16 %v215
    %v290 = vunpack.c.l.b16 %v216
    %v291 = vunpack.c.h.b16 %v216
    %v292 = vunpack.c.l.b16 %v217
    %v293 = vunpack.c.h.b16 %v217
    %v294 = vunpack.c.l.b16 %v218
    %v295 = vunpack.c.h.b16 %v218
    %v296 = vunpack.c.l.b16 %v219
    %v297 = vunpack.c.h.b16 %v219
    %v298 = vunpack.c.l.b16 %v220
    %v299 = vunpack.c.h.b16 %v220
    %v300 = vunpack.c.l.b16 %v221
    %v301 = vunpack.c.h.b16 %v221
    %v302 = vunpack.c.l.b16 %v222
    %v303 = vunpack.c.h.b16 %v222
    %v304 = vunpack.c.l.b16 %v223
    %v305 = vunpack.c.h.b16 %v223
    %v306 = vunpack.c.l.b16 %v224
    %v307 = vunpack.c.h.b16 %v224
    %v308 = vunpack.c.l.b16 %v225
    %v309 = vunpack.c.h.b16 %v225
    %v310 = vunpack.c.l.b16 %v226
    %v311 = vunpack.c.h.b16 %v226
    %v312 = vunpack.c.l.b16 %v227
    %v313 = vunpack.c.h.b16 %v227
    %v314 = vunpack.c.l.b16 %v228
    %v315 = vunpack.c.h.b16 %v228
    %v316 = vunpack.c.l.b16 %v229
    %v317 = vunpack.c.h.b16 %v229
    %v318 = vunpack.c.l.b16 %v230
    %v319 = vunpack.c.h.b16 %v230
    %v320 = vunpack.c.l.b16 %v231
    %v321 = vunpack.c.h.b16 %v231
    %v322 = vunpack.c.l.b16 %v232
    %v323 = vunpack.c.h.b16 %v232
    %v324 = vunpack.c.l.b16 %v233
    %v325 = vunpack.c.h.b16 %v233
    %v326 = vunpack.c.l.b16 %v234
    %v327 = vunpack.c.h.b16 %v234
    %v328 = vunpack.c.l.b16 %v235
    %v329 = vunpack.c.h.b16 %v235
    %v330 = vunpack.c.l.b16 %v236
    %v331 = vunpack.c.h.b16 %v236
    %v332 = vunpack.c.l.b16 %v237
    %v333 = vunpack.c.h.b16 %v237
    %v334 = vpack.c.b16 %v274, %v270
    %v335 = vpack.c.b16 %v275, %v271
    %v336 = vpack.c.b16 %v276, %v272
    %v337 = vpack.c.b16 %v277, %v273
    %v338 = vpack.c.b16 %v282, %v278
    %v339 = vpack.c.b16 %v283, %v279
    %v340 = vpack.c.b16 %v284, %v280
    %v341 = vpack.c.b16 %v285, %v281
    %v342 = vpack.c.b16 %v290, %v286
    %v343 = vpack.c.b16 %v291, %v287
    %v344 = vpack.c.b16 %v292, %v288
    %v345 = vpack.c.b16 %v293, %v289
    %v346 = vpack.c.b16 %v298, %v294
    %v347 = vpack.c.b16 %v299, %v295
    %v348 = vpack.c.b16 %v300, %v296
    %v349 = vpack.c.b16 %v301, %v297
    %v350 = vpack.c.b16 %v306, %v302
    %v351 = vpack.c.b16 %v307, %v303
    %v352 = vpack.c.b16 %v308, %v304
    %v353 = vpack.c.b16 %v309, %v305
    %v354 = vpack.c.b16 %v314, %v310
    %v355 = vpack.c.b16 %v315, %v311
    %v356 = vpack.c.b16 %v316, %v312
    %v357 = vpack.c.b16 %v317, %v313
    %v358 = vpack.c.b16 %v322, %v318
    %v359 = vpack.c.b16 %v323, %v319
    %v360 = vpack.c.b16 %v324, %v320
    %v361 = vpack.c.b16 %v325, %v321
    %v362 = vpack.c.b16 %v330, %v326
    %v363 = vpack.c.b16 %v331, %v327
    %v364 = vpack.c.b16 %v332, %v328
    %v365 = vpack.c.b16 %v333, %v329
    %398 = vmatprep.subr.bf16.mxu0 %v335
    %399 = vmatpush1.bf16.msra.mxu0 %v334
    %400 = vmatprep.subr.bf16.mxu0 %v339
    %401 = vmatpush1.bf16.msra.mxu0 %v338
    %402 = vmatprep.subr.bf16.mxu0 %v343
    %403 = vmatpush1.bf16.msra.mxu0 %v342
    %404 = vmatprep.subr.bf16.mxu0 %v347
    %405 = vmatpush1.bf16.msra.mxu0 %v346
    %406 = vmatprep.subr.bf16.mxu0 %v351
    %407 = vmatpush1.bf16.msra.mxu0 %v350
    %408 = vmatprep.subr.bf16.mxu0 %v355
    %409 = vmatpush1.bf16.msra.mxu0 %v354
    %410 = vmatprep.subr.bf16.mxu0 %v359
    %411 = vmatpush1.bf16.msra.mxu0 %v358
    %412 = vmatprep.subr.bf16.mxu0 %v363
    %413 = vmatpush1.bf16.msra.mxu0 %v362
    %414 = vmatprep.subr.bf16.mxu0 0
    %415 = vmatpush1.bf16.msra.mxu0 0
    %416 = vmatprep.subr.bf16.mxu0 0
    %417 = vmatpush1.bf16.msra.mxu0 0
    %418 = vmatprep.subr.bf16.mxu0 0
    %419 = vmatpush1.bf16.msra.mxu0 0
    %420 = vmatprep.subr.bf16.mxu0 0
    %421 = vmatpush1.bf16.msra.mxu0 0
    %422 = vmatprep.subr.bf16.mxu0 0
    %423 = vmatpush1.bf16.msra.mxu0 0
    %424 = vmatprep.subr.bf16.mxu0 0
    %425 = vmatpush1.bf16.msra.mxu0 0
    %426 = vmatprep.subr.bf16.mxu0 0
    %427 = vmatpush1.bf16.msra.mxu0 0
    %428 = vmatprep.subr.bf16.mxu0 0
    %429 = vmatpush1.bf16.msra.mxu0 0
    %430 = vmatprep.mubr.bf16.mxu0 0
    %431 = vmatmul.mubr.bf16.gmra.mrb[0].mxu0 0
    %v432 = vpop.f32.mrb[0].mxu0
    %v433 = vadd.f32 0.0, %v432
    %v434 = vpop.f32.mrb[0].mxu0
    %v435 = vadd.f32 0.0, %v434
    %v436 = vpop.f32.mrb[0].mxu0
    %v437 = vpop.f32.mrb[0].mxu0
    %438 = vdwg.mxu0
    %439 = vmatprep.subr.bf16.mxu0 %v337
    %440 = vmatpush1.bf16.msra.mxu0 %v336
    %441 = vmatprep.subr.bf16.mxu0 %v341
    %442 = vmatpush1.bf16.msra.mxu0 %v340
    %443 = vmatprep.subr.bf16.mxu0 %v345
    %444 = vmatpush1.bf16.msra.mxu0 %v344
    %445 = vmatprep.subr.bf16.mxu0 %v349
    %446 = vmatpush1.bf16.msra.mxu0 %v348
    %447 = vmatprep.subr.bf16.mxu0 %v353
    %448 = vmatpush1.bf16.msra.mxu0 %v352
    %449 = vmatprep.subr.bf16.mxu0 %v357
    %450 = vmatpush1.bf16.msra.mxu0 %v356
    %451 = vmatprep.subr.bf16.mxu0 %v361
    %452 = vmatpush1.bf16.msra.mxu0 %v360
    %453 = vmatprep.subr.bf16.mxu0 %v365
    %454 = vmatpush1.bf16.msra.mxu0 %v364
    %455 = vmatprep.subr.bf16.mxu0 0
    %456 = vmatpush1.bf16.msra.mxu0 0
    %457 = vmatprep.subr.bf16.mxu0 0
    %458 = vmatpush1.bf16.msra.mxu0 0
    %459 = vmatprep.subr.bf16.mxu0 0
    %460 = vmatpush1.bf16.msra.mxu0 0
    %461 = vmatprep.subr.bf16.mxu0 0
    %462 = vmatpush1.bf16.msra.mxu0 0
    %463 = vmatprep.subr.bf16.mxu0 0
    %464 = vmatpush1.bf16.msra.mxu0 0
    %465 = vmatprep.subr.bf16.mxu0 0
    %466 = vmatpush1.bf16.msra.mxu0 0
    %467 = vmatprep.subr.bf16.mxu0 0
    %468 = vmatpush1.bf16.msra.mxu0 0
    %469 = vmatprep.subr.bf16.mxu0 0
    %470 = vmatpush1.bf16.msra.mxu0 0
    %471 = vmatprep.mubr.bf16.mxu0 0
    %472 = vmatmul.mubr.bf16.gmra.mrb[0].mxu0 0
    %v473 = vpop.f32.mrb[0].mxu0
    %v474 = vadd.f32 0.0, %v473
    %v475 = vpop.f32.mrb[0].mxu0
    %v476 = vadd.f32 0.0, %v475
    %v477 = vpop.f32.mrb[0].mxu0
    %v478 = vpop.f32.mrb[0].mxu0
    %479 = vdwg.mxu0
    %v484 = vrot.slane %v433, 1
    %v485 = vrot.slane %v435, 1
    %v486 = vrot.slane %v474, 1
    %v487 = vrot.slane %v476, 1
    %v496 = vadd.f32 %v198, %v433
    %v497 = vadd.f32 %v199, %v435
    %v498 = vadd.f32 %v200, %v474
    %v499 = vadd.f32 %v201, %v476
    %v500 = vadd.f32 %v202, %v484
    %v501 = vadd.f32 %v203, %v485
    %v502 = vadd.f32 %v204, %v486
    %v503 = vadd.f32 %v205, %v487
    %v504 = vxor.u32 %v496, 2147483648
    %v505 = vxor.u32 %v500, 2147483648
    %v506 = vmul.f32 %v504, 1.442695
    %v507 = vpow.pop %v506
    %v508 = vmul.f32 %v505, 1.442695
    %v509 = vpow.pop %v508
    %v510 = vadd.f32 %v507, 1.0
    %v511 = vadd.f32 %v509, 1.0
    %v512 = vrcp.pop %v510
    %v513 = vmul.f32 1.0, %v512
    %v514 = vrcp.pop %v511
    %v515 = vmul.f32 1.0, %v514
    %v516 = vxor.u32 %v497, 2147483648
    %v517 = vxor.u32 %v501, 2147483648
    %v518 = vmul.f32 %v516, 1.442695
    %v519 = vpow.pop %v518
    %v520 = vmul.f32 %v517, 1.442695
    %v521 = vpow.pop %v520
    %v522 = vadd.f32 %v519, 1.0
    %v523 = vadd.f32 %v521, 1.0
    %v524 = vrcp.pop %v522
    %v525 = vmul.f32 1.0, %v524
    %v526 = vrcp.pop %v523
    %v527 = vmul.f32 1.0, %v526
    %v528 = vtanh.pop %v498
    %v529 = vtanh.pop %v502
    %v530 = vxor.u32 %v499, 2147483648
    %v531 = vxor.u32 %v503, 2147483648
    %v532 = vmul.f32 %v530, 1.442695
    %v533 = vpow.pop %v532
    %v534 = vmul.f32 %v531, 1.442695
    %v535 = vpow.pop %v534
    %v536 = vadd.f32 %v533, 1.0
    %v537 = vadd.f32 %v535, 1.0
    %v538 = vrcp.pop %v536
    %v539 = vmul.f32 1.0, %v538
    %v540 = vrcp.pop %v537
    %v541 = vmul.f32 1.0, %v540
    %v542 = vmul.f32 %v525, 0.0
    %v543 = vmul.f32 %v527, 0.0
    %v544 = vmul.f32 %v513, %v528
    %v545 = vmul.f32 %v515, %v529
    %v546 = vadd.f32 %v542, %v544
    %v547 = vadd.f32 %v543, %v545
    %v548 = vtanh.pop %v546
    %v549 = vtanh.pop %v547
    %v550 = vmul.f32 %v539, %v548
    %v551 = vmul.f32 %v541, %v549
    %v552 = vpack.c.bf16 %v550, %v550
    %v553 = vpack.c.bf16 %v551, %v551
    %v556 = vunpack.c.l.b16 %v552
    %v557 = vunpack.c.l.b16 %v553
    %v558 = vrot.slane %v557, 7
    %vm559 = vcmask 1041409
    %v560 = vsel %vm559, %v558, %v556
    %v561 = vpack.c.b16 %v560, %v560
    %563 = vmatprep.subr.bf16.mxu0 %v335
    %564 = vmatpush1.bf16.msra.mxu0 %v334
    %565 = vmatprep.subr.bf16.mxu0 %v339
    %566 = vmatpush1.bf16.msra.mxu0 %v338
    %567 = vmatprep.subr.bf16.mxu0 %v343
    %568 = vmatpush1.bf16.msra.mxu0 %v342
    %569 = vmatprep.subr.bf16.mxu0 %v347
    %570 = vmatpush1.bf16.msra.mxu0 %v346
    %571 = vmatprep.subr.bf16.mxu0 %v351
    %572 = vmatpush1.bf16.msra.mxu0 %v350
    %573 = vmatprep.subr.bf16.mxu0 %v355
    %574 = vmatpush1.bf16.msra.mxu0 %v354
    %575 = vmatprep.subr.bf16.mxu0 %v359
    %576 = vmatpush1.bf16.msra.mxu0 %v358
    %577 = vmatprep.subr.bf16.mxu0 %v363
    %578 = vmatpush1.bf16.msra.mxu0 %v362
    %579 = vmatprep.subr.bf16.mxu0 0
    %580 = vmatpush1.bf16.msra.mxu0 0
    %581 = vmatprep.subr.bf16.mxu0 0
    %582 = vmatpush1.bf16.msra.mxu0 0
    %583 = vmatprep.subr.bf16.mxu0 0
    %584 = vmatpush1.bf16.msra.mxu0 0
    %585 = vmatprep.subr.bf16.mxu0 0
    %586 = vmatpush1.bf16.msra.mxu0 0
    %587 = vmatprep.subr.bf16.mxu0 0
    %588 = vmatpush1.bf16.msra.mxu0 0
    %589 = vmatprep.subr.bf16.mxu0 0
    %590 = vmatpush1.bf16.msra.mxu0 0
    %591 = vmatprep.subr.bf16.mxu0 0
    %592 = vmatpush1.bf16.msra.mxu0 0
    %593 = vmatprep.subr.bf16.mxu0 0
    %594 = vmatpush1.bf16.msra.mxu0 0
    %595 = vmatprep.mubr.bf16.mxu0 0
    %596 = vmatmul.mubr.bf16.gmra.mrb[0].mxu0 %v561
    %v597 = vpop.f32.mrb[0].mxu0
    %v598 = vadd.f32 0.0, %v597
    %v599 = vpop.f32.mrb[0].mxu0
    %v600 = vadd.f32 0.0, %v599
    %v601 = vpop.f32.mrb[0].mxu0
    %v602 = vpop.f32.mrb[0].mxu0
    %603 = vdwg.mxu0
    %604 = vmatprep.subr.bf16.mxu0 %v337
    %605 = vmatpush1.bf16.msra.mxu0 %v336
    %606 = vmatprep.subr.bf16.mxu0 %v341
    %607 = vmatpush1.bf16.msra.mxu0 %v340
    %608 = vmatprep.subr.bf16.mxu0 %v345
    %609 = vmatpush1.bf16.msra.mxu0 %v344
    %610 = vmatprep.subr.bf16.mxu0 %v349
    %611 = vmatpush1.bf16.msra.mxu0 %v348
    %612 = vmatprep.subr.bf16.mxu0 %v353
    %613 = vmatpush1.bf16.msra.mxu0 %v352
    %614 = vmatprep.subr.bf16.mxu0 %v357
    %615 = vmatpush1.bf16.msra.mxu0 %v356
    %616 = vmatprep.subr.bf16.mxu0 %v361
    %617 = vmatpush1.bf16.msra.mxu0 %v360
    %618 = vmatprep.subr.bf16.mxu0 %v365
    %619 = vmatpush1.bf16.msra.mxu0 %v364
    %620 = vmatprep.subr.bf16.mxu0 0
    %621 = vmatpush1.bf16.msra.mxu0 0
    %622 = vmatprep.subr.bf16.mxu0 0
    %623 = vmatpush1.bf16.msra.mxu0 0
    %624 = vmatprep.subr.bf16.mxu0 0
    %625 = vmatpush1.bf16.msra.mxu0 0
    %626 = vmatprep.subr.bf16.mxu0 0
    %627 = vmatpush1.bf16.msra.mxu0 0
    %628 = vmatprep.subr.bf16.mxu0 0
    %629 = vmatpush1.bf16.msra.mxu0 0
    %630 = vmatprep.subr.bf16.mxu0 0
    %631 = vmatpush1.bf16.msra.mxu0 0
    %632 = vmatprep.subr.bf16.mxu0 0
    %633 = vmatpush1.bf16.msra.mxu0 0
    %634 = vmatprep.subr.bf16.mxu0 0
    %635 = vmatpush1.bf16.msra.mxu0 0
    %636 = vmatprep.mubr.bf16.mxu0 0
    %637 = vmatmul.mubr.bf16.gmra.mrb[0].mxu0 %v561
    %v638 = vpop.f32.mrb[0].mxu0
    %v639 = vadd.f32 0.0, %v638
    %v640 = vpop.f32.mrb[0].mxu0
    %v641 = vadd.f32 0.0, %v640
    %v642 = vpop.f32.mrb[0].mxu0
    %v643 = vpop.f32.mrb[0].mxu0
    %644 = vdwg.mxu0
    %v649 = vrot.slane %v598, 7
    %v650 = vrot.slane %v600, 7
    %v651 = vrot.slane %v639, 7
    %v652 = vrot.slane %v641, 7
    %v661 = vadd.f32 %v198, %v649
    %v662 = vadd.f32 %v199, %v650
    %v663 = vadd.f32 %v200, %v651
    %v664 = vadd.f32 %v201, %v652
    %v665 = vadd.f32 %v202, %v598
    %v666 = vadd.f32 %v203, %v600
    %v667 = vadd.f32 %v204, %v639
    %v668 = vadd.f32 %v205, %v641
    %v669 = vxor.u32 %v661, 2147483648
    %v670 = vxor.u32 %v665, 2147483648
    %v671 = vmul.f32 %v669, 1.442695
    %v672 = vpow.pop %v671
    %v673 = vmul.f32 %v670, 1.442695
    %v674 = vpow.pop %v673
    %v675 = vadd.f32 %v672, 1.0
    %v676 = vadd.f32 %v674, 1.0
    %v677 = vrcp.pop %v675
    %v678 = vmul.f32 1.0, %v677
    %v679 = vrcp.pop %v676
    %v680 = vmul.f32 1.0, %v679
    %v681 = vxor.u32 %v662, 2147483648
    %v682 = vxor.u32 %v666, 2147483648
    %v683 = vmul.f32 %v681, 1.442695
    %v684 = vpow.pop %v683
    %v685 = vmul.f32 %v682, 1.442695
    %v686 = vpow.pop %v685
    %v687 = vadd.f32 %v684, 1.0
    %v688 = vadd.f32 %v686, 1.0
    %v689 = vrcp.pop %v687
    %v690 = vmul.f32 1.0, %v689
    %v691 = vrcp.pop %v688
    %v692 = vmul.f32 1.0, %v691
    %v693 = vtanh.pop %v663
    %v694 = vtanh.pop %v667
    %v695 = vxor.u32 %v664, 2147483648
    %v696 = vxor.u32 %v668, 2147483648
    %v697 = vmul.f32 %v695, 1.442695
    %v698 = vpow.pop %v697
    %v699 = vmul.f32 %v696, 1.442695
    %v700 = vpow.pop %v699
    %v701 = vadd.f32 %v698, 1.0
    %v702 = vadd.f32 %v700, 1.0
    %v703 = vrcp.pop %v701
    %v704 = vmul.f32 1.0, %v703
    %v705 = vrcp.pop %v702
    %v706 = vmul.f32 1.0, %v705
    %v709 = vrot.slane %v546, 7
    %v710 = vrot.slane %v547, 7
    %v713 = vmul.f32 %v690, %v709
    %v714 = vmul.f32 %v692, %v710
    %v715 = vmul.f32 %v678, %v693
    %v716 = vmul.f32 %v680, %v694
    %v717 = vadd.f32 %v713, %v715
    %v718 = vadd.f32 %v714, %v716
    %v719 = vtanh.pop %v717
    %v720 = vtanh.pop %v718
    %v721 = vmul.f32 %v704, %v719
    %v722 = vmul.f32 %v706, %v720
    %v723 = vpack.c.bf16 %v721, %v721
    %v724 = vpack.c.bf16 %v722, %v722
    %v727 = vunpack.c.l.b16 %v723
    %v728 = vunpack.c.l.b16 %v724
    %v729 = vrot.slane %v727, 1
    %v730 = vsel %vm559, %v728, %v729
    %v731 = vpack.c.b16 %v730, %v730
    %733 = vmatprep.subr.bf16.mxu0 %v335
    %734 = vmatpush1.bf16.msra.mxu0 %v334
    %735 = vmatprep.subr.bf16.mxu0 %v339
    %736 = vmatpush1.bf16.msra.mxu0 %v338
    %737 = vmatprep.subr.bf16.mxu0 %v343
    %738 = vmatpush1.bf16.msra.mxu0 %v342
    %739 = vmatprep.subr.bf16.mxu0 %v347
    %740 = vmatpush1.bf16.msra.mxu0 %v346
    %741 = vmatprep.subr.bf16.mxu0 %v351
    %742 = vmatpush1.bf16.msra.mxu0 %v350
    %743 = vmatprep.subr.bf16.mxu0 %v355
    %744 = vmatpush1.bf16.msra.mxu0 %v354
    %745 = vmatprep.subr.bf16.mxu0 %v359
    %746 = vmatpush1.bf16.msra.mxu0 %v358
    %747 = vmatprep.subr.bf16.mxu0 %v363
    %748 = vmatpush1.bf16.msra.mxu0 %v362
    %749 = vmatprep.subr.bf16.mxu0 0
    %750 = vmatpush1.bf16.msra.mxu0 0
    %751 = vmatprep.subr.bf16.mxu0 0
    %752 = vmatpush1.bf16.msra.mxu0 0
    %753 = vmatprep.subr.bf16.mxu0 0
    %754 = vmatpush1.bf16.msra.mxu0 0
    %755 = vmatprep.subr.bf16.mxu0 0
    %756 = vmatpush1.bf16.msra.mxu0 0
    %757 = vmatprep.subr.bf16.mxu0 0
    %758 = vmatpush1.bf16.msra.mxu0 0
    %759 = vmatprep.subr.bf16.mxu0 0
    %760 = vmatpush1.bf16.msra.mxu0 0
    %761 = vmatprep.subr.bf16.mxu0 0
    %762 = vmatpush1.bf16.msra.mxu0 0
    %763 = vmatprep.subr.bf16.mxu0 0
    %764 = vmatpush1.bf16.msra.mxu0 0
    %765 = vmatprep.mubr.bf16.mxu0 0
    %766 = vmatmul.mubr.bf16.gmra.mrb[0].mxu0 %v731
    %v767 = vpop.f32.mrb[0].mxu0
    %v768 = vadd.f32 0.0, %v767
    %v769 = vpop.f32.mrb[0].mxu0
    %v770 = vadd.f32 0.0, %v769
    %v771 = vpop.f32.mrb[0].mxu0
    %v772 = vpop.f32.mrb[0].mxu0
    %773 = vdwg.mxu0
    %774 = vmatprep.subr.bf16.mxu0 %v337
    %775 = vmatpush1.bf16.msra.mxu0 %v336
    %776 = vmatprep.subr.bf16.mxu0 %v341
    %777 = vmatpush1.bf16.msra.mxu0 %v340
    %778 = vmatprep.subr.bf16.mxu0 %v345
    %779 = vmatpush1.bf16.msra.mxu0 %v344
    %780 = vmatprep.subr.bf16.mxu0 %v349
    %781 = vmatpush1.bf16.msra.mxu0 %v348
    %782 = vmatprep.subr.bf16.mxu0 %v353
    %783 = vmatpush1.bf16.msra.mxu0 %v352
    %784 = vmatprep.subr.bf16.mxu0 %v357
    %785 = vmatpush1.bf16.msra.mxu0 %v356
    %786 = vmatprep.subr.bf16.mxu0 %v361
    %787 = vmatpush1.bf16.msra.mxu0 %v360
    %788 = vmatprep.subr.bf16.mxu0 %v365
    %789 = vmatpush1.bf16.msra.mxu0 %v364
    %790 = vmatprep.subr.bf16.mxu0 0
    %791 = vmatpush1.bf16.msra.mxu0 0
    %792 = vmatprep.subr.bf16.mxu0 0
    %793 = vmatpush1.bf16.msra.mxu0 0
    %794 = vmatprep.subr.bf16.mxu0 0
    %795 = vmatpush1.bf16.msra.mxu0 0
    %796 = vmatprep.subr.bf16.mxu0 0
    %797 = vmatpush1.bf16.msra.mxu0 0
    %798 = vmatprep.subr.bf16.mxu0 0
    %799 = vmatpush1.bf16.msra.mxu0 0
    %800 = vmatprep.subr.bf16.mxu0 0
    %801 = vmatpush1.bf16.msra.mxu0 0
    %802 = vmatprep.subr.bf16.mxu0 0
    %803 = vmatpush1.bf16.msra.mxu0 0
    %804 = vmatprep.subr.bf16.mxu0 0
    %805 = vmatpush1.bf16.msra.mxu0 0
    %806 = vmatprep.mubr.bf16.mxu0 0
    %807 = vmatmul.mubr.bf16.gmra.mrb[0].mxu0 %v731
    %v808 = vpop.f32.mrb[0].mxu0
    %v809 = vadd.f32 0.0, %v808
    %v810 = vpop.f32.mrb[0].mxu0
    %v811 = vadd.f32 0.0, %v810
    %v812 = vpop.f32.mrb[0].mxu0
    %v813 = vpop.f32.mrb[0].mxu0
    %814 = vdwg.mxu0
    %v819 = vrot.slane %v768, 6
    %v820 = vrot.slane %v770, 6
    %v821 = vrot.slane %v809, 6
    %v822 = vrot.slane %v811, 6
    %v823 = vrot.slane %v768, 7
    %v824 = vrot.slane %v770, 7
    %v825 = vrot.slane %v809, 7
    %v826 = vrot.slane %v811, 7
    %v835 = vadd.f32 %v198, %v819
    %v836 = vadd.f32 %v199, %v820
    %v837 = vadd.f32 %v200, %v821
    %v838 = vadd.f32 %v201, %v822
    %v839 = vadd.f32 %v202, %v823
    %v840 = vadd.f32 %v203, %v824
    %v841 = vadd.f32 %v204, %v825
    %v842 = vadd.f32 %v205, %v826
    %v843 = vxor.u32 %v835, 2147483648
    %v844 = vxor.u32 %v839, 2147483648
    %v845 = vmul.f32 %v843, 1.442695
    %v846 = vpow.pop %v845
    %v847 = vmul.f32 %v844, 1.442695
    %v848 = vpow.pop %v847
    %v849 = vadd.f32 %v846, 1.0
    %v850 = vadd.f32 %v848, 1.0
    %v851 = vrcp.pop %v849
    %v852 = vmul.f32 1.0, %v851
    %v853 = vrcp.pop %v850
    %v854 = vmul.f32 1.0, %v853
    %v855 = vxor.u32 %v836, 2147483648
    %v856 = vxor.u32 %v840, 2147483648
    %v857 = vmul.f32 %v855, 1.442695
    %v858 = vpow.pop %v857
    %v859 = vmul.f32 %v856, 1.442695
    %v860 = vpow.pop %v859
    %v861 = vadd.f32 %v858, 1.0
    %v862 = vadd.f32 %v860, 1.0
    %v863 = vrcp.pop %v861
    %v864 = vmul.f32 1.0, %v863
    %v865 = vrcp.pop %v862
    %v866 = vmul.f32 1.0, %v865
    %v867 = vtanh.pop %v837
    %v868 = vtanh.pop %v841
    %v869 = vxor.u32 %v838, 2147483648
    %v870 = vxor.u32 %v842, 2147483648
    %v871 = vmul.f32 %v869, 1.442695
    %v872 = vpow.pop %v871
    %v873 = vmul.f32 %v870, 1.442695
    %v874 = vpow.pop %v873
    %v875 = vadd.f32 %v872, 1.0
    %v876 = vadd.f32 %v874, 1.0
    %v877 = vrcp.pop %v875
    %v878 = vmul.f32 1.0, %v877
    %v879 = vrcp.pop %v876
    %v880 = vmul.f32 1.0, %v879
    %v883 = vrot.slane %v717, 7
    %v884 = vrot.slane %v718, 7
    %v887 = vmul.f32 %v864, %v883
    %v888 = vmul.f32 %v866, %v884
    %v889 = vmul.f32 %v852, %v867
    %v890 = vmul.f32 %v854, %v868
    %v891 = vadd.f32 %v887, %v889
    %v892 = vadd.f32 %v888, %v890
    %v893 = vtanh.pop %v891
    %v894 = vtanh.pop %v892
    %v895 = vmul.f32 %v878, %v893
    %v896 = vmul.f32 %v880, %v894
    %v897 = vpack.c.bf16 %v895, %v895
    %v898 = vpack.c.bf16 %v896, %v896
    %v901 = vunpack.c.l.b16 %v897
    %v902 = vunpack.c.l.b16 %v898
    %v903 = vrot.slane %v901, 2
    %v904 = vrot.slane %v902, 1
    %v905 = vsel %vm559, %v904, %v903
    %v906 = vpack.c.b16 %v905, %v905
    %908 = vmatprep.subr.bf16.mxu0 %v335
    %909 = vmatpush1.bf16.msra.mxu0 %v334
    %910 = vmatprep.subr.bf16.mxu0 %v339
    %911 = vmatpush1.bf16.msra.mxu0 %v338
    %912 = vmatprep.subr.bf16.mxu0 %v343
    %913 = vmatpush1.bf16.msra.mxu0 %v342
    %914 = vmatprep.subr.bf16.mxu0 %v347
    %915 = vmatpush1.bf16.msra.mxu0 %v346
    %916 = vmatprep.subr.bf16.mxu0 %v351
    %917 = vmatpush1.bf16.msra.mxu0 %v350
    %918 = vmatprep.subr.bf16.mxu0 %v355
    %919 = vmatpush1.bf16.msra.mxu0 %v354
    %920 = vmatprep.subr.bf16.mxu0 %v359
    %921 = vmatpush1.bf16.msra.mxu0 %v358
    %922 = vmatprep.subr.bf16.mxu0 %v363
    %923 = vmatpush1.bf16.msra.mxu0 %v362
    %924 = vmatprep.subr.bf16.mxu0 0
    %925 = vmatpush1.bf16.msra.mxu0 0
    %926 = vmatprep.subr.bf16.mxu0 0
    %927 = vmatpush1.bf16.msra.mxu0 0
    %928 = vmatprep.subr.bf16.mxu0 0
    %929 = vmatpush1.bf16.msra.mxu0 0
    %930 = vmatprep.subr.bf16.mxu0 0
    %931 = vmatpush1.bf16.msra.mxu0 0
    %932 = vmatprep.subr.bf16.mxu0 0
    %933 = vmatpush1.bf16.msra.mxu0 0
    %934 = vmatprep.subr.bf16.mxu0 0
    %935 = vmatpush1.bf16.msra.mxu0 0
    %936 = vmatprep.subr.bf16.mxu0 0
    %937 = vmatpush1.bf16.msra.mxu0 0
    %938 = vmatprep.subr.bf16.mxu0 0
    %939 = vmatpush1.bf16.msra.mxu0 0
    %940 = vmatprep.mubr.bf16.mxu0 0
    %941 = vmatmul.mubr.bf16.gmra.mrb[0].mxu0 %v906
    %v942 = vpop.f32.mrb[0].mxu0
    %v943 = vadd.f32 0.0, %v942
    %v944 = vpop.f32.mrb[0].mxu0
    %v945 = vadd.f32 0.0, %v944
    %v946 = vpop.f32.mrb[0].mxu0
    %v947 = vpop.f32.mrb[0].mxu0
    %948 = vdwg.mxu0
    %949 = vmatprep.subr.bf16.mxu0 %v337
    %950 = vmatpush1.bf16.msra.mxu0 %v336
    %951 = vmatprep.subr.bf16.mxu0 %v341
    %952 = vmatpush1.bf16.msra.mxu0 %v340
    %953 = vmatprep.subr.bf16.mxu0 %v345
    %954 = vmatpush1.bf16.msra.mxu0 %v344
    %955 = vmatprep.subr.bf16.mxu0 %v349
    %956 = vmatpush1.bf16.msra.mxu0 %v348
    %957 = vmatprep.subr.bf16.mxu0 %v353
    %958 = vmatpush1.bf16.msra.mxu0 %v352
    %959 = vmatprep.subr.bf16.mxu0 %v357
    %960 = vmatpush1.bf16.msra.mxu0 %v356
    %961 = vmatprep.subr.bf16.mxu0 %v361
    %962 = vmatpush1.bf16.msra.mxu0 %v360
    %963 = vmatprep.subr.bf16.mxu0 %v365
    %964 = vmatpush1.bf16.msra.mxu0 %v364
    %965 = vmatprep.subr.bf16.mxu0 0
    %966 = vmatpush1.bf16.msra.mxu0 0
    %967 = vmatprep.subr.bf16.mxu0 0
    %968 = vmatpush1.bf16.msra.mxu0 0
    %969 = vmatprep.subr.bf16.mxu0 0
    %970 = vmatpush1.bf16.msra.mxu0 0
    %971 = vmatprep.subr.bf16.mxu0 0
    %972 = vmatpush1.bf16.msra.mxu0 0
    %973 = vmatprep.subr.bf16.mxu0 0
    %974 = vmatpush1.bf16.msra.mxu0 0
    %975 = vmatprep.subr.bf16.mxu0 0
    %976 = vmatpush1.bf16.msra.mxu0 0
    %977 = vmatprep.subr.bf16.mxu0 0
    %978 = vmatpush1.bf16.msra.mxu0 0
    %979 = vmatprep.subr.bf16.mxu0 0
    %980 = vmatpush1.bf16.msra.mxu0 0
    %981 = vmatprep.mubr.bf16.mxu0 0
    %982 = vmatmul.mubr.bf16.gmra.mrb[0].mxu0 %v906
    %v983 = vpop.f32.mrb[0].mxu0
    %v984 = vadd.f32 0.0, %v983
    %v985 = vpop.f32.mrb[0].mxu0
    %v986 = vadd.f32 0.0, %v985
    %v987 = vpop.f32.mrb[0].mxu0
    %v988 = vpop.f32.mrb[0].mxu0
    %989 = vdwg.mxu0
    %v994 = vrot.slane %v943, 5
    %v995 = vrot.slane %v945, 5
    %v996 = vrot.slane %v984, 5
    %v997 = vrot.slane %v986, 5
    %v998 = vrot.slane %v943, 6
    %v999 = vrot.slane %v945, 6
    %v1000 = vrot.slane %v984, 6
    %v1001 = vrot.slane %v986, 6
    %v1010 = vadd.f32 %v198, %v994
    %v1011 = vadd.f32 %v199, %v995
    %v1012 = vadd.f32 %v200, %v996
    %v1013 = vadd.f32 %v201, %v997
    %v1014 = vadd.f32 %v202, %v998
    %v1015 = vadd.f32 %v203, %v999
    %v1016 = vadd.f32 %v204, %v1000
    %v1017 = vadd.f32 %v205, %v1001
    %v1018 = vxor.u32 %v1010, 2147483648
    %v1019 = vxor.u32 %v1014, 2147483648
    %v1020 = vmul.f32 %v1018, 1.442695
    %v1021 = vpow.pop %v1020
    %v1022 = vmul.f32 %v1019, 1.442695
    %v1023 = vpow.pop %v1022
    %v1024 = vadd.f32 %v1021, 1.0
    %v1025 = vadd.f32 %v1023, 1.0
    %v1026 = vrcp.pop %v1024
    %v1027 = vmul.f32 1.0, %v1026
    %v1028 = vrcp.pop %v1025
    %v1029 = vmul.f32 1.0, %v1028
    %v1030 = vxor.u32 %v1011, 2147483648
    %v1031 = vxor.u32 %v1015, 2147483648
    %v1032 = vmul.f32 %v1030, 1.442695
    %v1033 = vpow.pop %v1032
    %v1034 = vmul.f32 %v1031, 1.442695
    %v1035 = vpow.pop %v1034
    %v1036 = vadd.f32 %v1033, 1.0
    %v1037 = vadd.f32 %v1035, 1.0
    %v1038 = vrcp.pop %v1036
    %v1039 = vmul.f32 1.0, %v1038
    %v1040 = vrcp.pop %v1037
    %v1041 = vmul.f32 1.0, %v1040
    %v1042 = vtanh.pop %v1012
    %v1043 = vtanh.pop %v1016
    %v1044 = vxor.u32 %v1013, 2147483648
    %v1045 = vxor.u32 %v1017, 2147483648
    %v1046 = vmul.f32 %v1044, 1.442695
    %v1047 = vpow.pop %v1046
    %v1048 = vmul.f32 %v1045, 1.442695
    %v1049 = vpow.pop %v1048
    %v1050 = vadd.f32 %v1047, 1.0
    %v1051 = vadd.f32 %v1049, 1.0
    %v1052 = vrcp.pop %v1050
    %v1053 = vmul.f32 1.0, %v1052
    %v1054 = vrcp.pop %v1051
    %v1055 = vmul.f32 1.0, %v1054
    %v1058 = vrot.slane %v891, 7
    %v1059 = vrot.slane %v892, 7
    %v1062 = vmul.f32 %v1039, %v1058
    %v1063 = vmul.f32 %v1041, %v1059
    %v1064 = vmul.f32 %v1027, %v1042
    %v1065 = vmul.f32 %v1029, %v1043
    %v1066 = vadd.f32 %v1062, %v1064
    %v1067 = vadd.f32 %v1063, %v1065
    %v1068 = vtanh.pop %v1066
    %v1069 = vtanh.pop %v1067
    %v1070 = vmul.f32 %v1053, %v1068
    %v1071 = vmul.f32 %v1055, %v1069
    %v1072 = vpack.c.bf16 %v1070, %v1070
    %v1073 = vpack.c.bf16 %v1071, %v1071
    %v1076 = vunpack.c.l.b16 %v1072
    %v1077 = vunpack.c.l.b16 %v1073
    %v1078 = vrot.slane %v1076, 3
    %v1079 = vrot.slane %v1077, 2
    %v1080 = vsel %vm559, %v1079, %v1078
    %v1081 = vpack.c.b16 %v1080, %v1080
    %1083 = vmatprep.subr.bf16.mxu0 %v335
    %1084 = vmatpush1.bf16.msra.mxu0 %v334
    %1085 = vmatprep.subr.bf16.mxu0 %v339
    %1086 = vmatpush1.bf16.msra.mxu0 %v338
    %1087 = vmatprep.subr.bf16.mxu0 %v343
    %1088 = vmatpush1.bf16.msra.mxu0 %v342
    %1089 = vmatprep.subr.bf16.mxu0 %v347
    %1090 = vmatpush1.bf16.msra.mxu0 %v346
    %1091 = vmatprep.subr.bf16.mxu0 %v351
    %1092 = vmatpush1.bf16.msra.mxu0 %v350
    %1093 = vmatprep.subr.bf16.mxu0 %v355
    %1094 = vmatpush1.bf16.msra.mxu0 %v354
    %1095 = vmatprep.subr.bf16.mxu0 %v359
    %1096 = vmatpush1.bf16.msra.mxu0 %v358
    %1097 = vmatprep.subr.bf16.mxu0 %v363
    %1098 = vmatpush1.bf16.msra.mxu0 %v362
    %1099 = vmatprep.subr.bf16.mxu0 0
    %1100 = vmatpush1.bf16.msra.mxu0 0
    %1101 = vmatprep.subr.bf16.mxu0 0
    %1102 = vmatpush1.bf16.msra.mxu0 0
    %1103 = vmatprep.subr.bf16.mxu0 0
    %1104 = vmatpush1.bf16.msra.mxu0 0
    %1105 = vmatprep.subr.bf16.mxu0 0
    %1106 = vmatpush1.bf16.msra.mxu0 0
    %1107 = vmatprep.subr.bf16.mxu0 0
    %1108 = vmatpush1.bf16.msra.mxu0 0
    %1109 = vmatprep.subr.bf16.mxu0 0
    %1110 = vmatpush1.bf16.msra.mxu0 0
    %1111 = vmatprep.subr.bf16.mxu0 0
    %1112 = vmatpush1.bf16.msra.mxu0 0
    %1113 = vmatprep.subr.bf16.mxu0 0
    %1114 = vmatpush1.bf16.msra.mxu0 0
    %1115 = vmatprep.mubr.bf16.mxu0 0
    %1116 = vmatmul.mubr.bf16.gmra.mrb[0].mxu0 %v1081
    %v1117 = vpop.f32.mrb[0].mxu0
    %v1118 = vadd.f32 0.0, %v1117
    %v1119 = vpop.f32.mrb[0].mxu0
    %v1120 = vadd.f32 0.0, %v1119
    %v1121 = vpop.f32.mrb[0].mxu0
    %v1122 = vpop.f32.mrb[0].mxu0
    %1123 = vdwg.mxu0
    %1124 = vmatprep.subr.bf16.mxu0 %v337
    %1125 = vmatpush1.bf16.msra.mxu0 %v336
    %1126 = vmatprep.subr.bf16.mxu0 %v341
    %1127 = vmatpush1.bf16.msra.mxu0 %v340
    %1128 = vmatprep.subr.bf16.mxu0 %v345
    %1129 = vmatpush1.bf16.msra.mxu0 %v344
    %1130 = vmatprep.subr.bf16.mxu0 %v349
    %1131 = vmatpush1.bf16.msra.mxu0 %v348
    %1132 = vmatprep.subr.bf16.mxu0 %v353
    %1133 = vmatpush1.bf16.msra.mxu0 %v352
    %1134 = vmatprep.subr.bf16.mxu0 %v357
    %1135 = vmatpush1.bf16.msra.mxu0 %v356
    %1136 = vmatprep.subr.bf16.mxu0 %v361
    %1137 = vmatpush1.bf16.msra.mxu0 %v360
    %1138 = vmatprep.subr.bf16.mxu0 %v365
    %1139 = vmatpush1.bf16.msra.mxu0 %v364
    %1140 = vmatprep.subr.bf16.mxu0 0
    %1141 = vmatpush1.bf16.msra.mxu0 0
    %1142 = vmatprep.subr.bf16.mxu0 0
    %1143 = vmatpush1.bf16.msra.mxu0 0
    %1144 = vmatprep.subr.bf16.mxu0 0
    %1145 = vmatpush1.bf16.msra.mxu0 0
    %1146 = vmatprep.subr.bf16.mxu0 0
    %1147 = vmatpush1.bf16.msra.mxu0 0
    %1148 = vmatprep.subr.bf16.mxu0 0
    %1149 = vmatpush1.bf16.msra.mxu0 0
    %1150 = vmatprep.subr.bf16.mxu0 0
    %1151 = vmatpush1.bf16.msra.mxu0 0
    %1152 = vmatprep.subr.bf16.mxu0 0
    %1153 = vmatpush1.bf16.msra.mxu0 0
    %1154 = vmatprep.subr.bf16.mxu0 0
    %1155 = vmatpush1.bf16.msra.mxu0 0
    %1156 = vmatprep.mubr.bf16.mxu0 0
    %1157 = vmatmul.mubr.bf16.gmra.mrb[0].mxu0 %v1081
    %v1158 = vpop.f32.mrb[0].mxu0
    %v1159 = vadd.f32 0.0, %v1158
    %v1160 = vpop.f32.mrb[0].mxu0
    %v1161 = vadd.f32 0.0, %v1160
    %v1162 = vpop.f32.mrb[0].mxu0
    %v1163 = vpop.f32.mrb[0].mxu0
    %1164 = vdwg.mxu0
    %v1169 = vrot.slane %v1118, 4
    %v1170 = vrot.slane %v1120, 4
    %v1171 = vrot.slane %v1159, 4
    %v1172 = vrot.slane %v1161, 4
    %v1173 = vrot.slane %v1118, 5
    %v1174 = vrot.slane %v1120, 5
    %v1175 = vrot.slane %v1159, 5
    %v1176 = vrot.slane %v1161, 5
    %v1185 = vadd.f32 %v198, %v1169
    %v1186 = vadd.f32 %v199, %v1170
    %v1187 = vadd.f32 %v200, %v1171
    %v1188 = vadd.f32 %v201, %v1172
    %v1189 = vadd.f32 %v202, %v1173
    %v1190 = vadd.f32 %v203, %v1174
    %v1191 = vadd.f32 %v204, %v1175
    %v1192 = vadd.f32 %v205, %v1176
    %v1193 = vxor.u32 %v1185, 2147483648
    %v1194 = vxor.u32 %v1189, 2147483648
    %v1195 = vmul.f32 %v1193, 1.442695
    %v1196 = vpow.pop %v1195
    %v1197 = vmul.f32 %v1194, 1.442695
    %v1198 = vpow.pop %v1197
    %v1199 = vadd.f32 %v1196, 1.0
    %v1200 = vadd.f32 %v1198, 1.0
    %v1201 = vrcp.pop %v1199
    %v1202 = vmul.f32 1.0, %v1201
    %v1203 = vrcp.pop %v1200
    %v1204 = vmul.f32 1.0, %v1203
    %v1205 = vxor.u32 %v1186, 2147483648
    %v1206 = vxor.u32 %v1190, 2147483648
    %v1207 = vmul.f32 %v1205, 1.442695
    %v1208 = vpow.pop %v1207
    %v1209 = vmul.f32 %v1206, 1.442695
    %v1210 = vpow.pop %v1209
    %v1211 = vadd.f32 %v1208, 1.0
    %v1212 = vadd.f32 %v1210, 1.0
    %v1213 = vrcp.pop %v1211
    %v1214 = vmul.f32 1.0, %v1213
    %v1215 = vrcp.pop %v1212
    %v1216 = vmul.f32 1.0, %v1215
    %v1217 = vtanh.pop %v1187
    %v1218 = vtanh.pop %v1191
    %v1219 = vxor.u32 %v1188, 2147483648
    %v1220 = vxor.u32 %v1192, 2147483648
    %v1221 = vmul.f32 %v1219, 1.442695
    %v1222 = vpow.pop %v1221
    %v1223 = vmul.f32 %v1220, 1.442695
    %v1224 = vpow.pop %v1223
    %v1225 = vadd.f32 %v1222, 1.0
    %v1226 = vadd.f32 %v1224, 1.0
    %v1227 = vrcp.pop %v1225
    %v1228 = vmul.f32 1.0, %v1227
    %v1229 = vrcp.pop %v1226
    %v1230 = vmul.f32 1.0, %v1229
    %v1233 = vrot.slane %v1066, 7
    %v1234 = vrot.slane %v1067, 7
    %v1237 = vmul.f32 %v1214, %v1233
    %v1238 = vmul.f32 %v1216, %v1234
    %v1239 = vmul.f32 %v1202, %v1217
    %v1240 = vmul.f32 %v1204, %v1218
    %v1241 = vadd.f32 %v1237, %v1239
    %v1242 = vadd.f32 %v1238, %v1240
    %v1243 = vtanh.pop %v1241
    %v1244 = vtanh.pop %v1242
    %v1245 = vmul.f32 %v1228, %v1243
    %v1246 = vmul.f32 %v1230, %v1244
    %v1247 = vpack.c.bf16 %v1245, %v1245
    %v1248 = vpack.c.bf16 %v1246, %v1246
    %v1251 = vunpack.c.l.b16 %v1247
    %v1252 = vunpack.c.l.b16 %v1248
    %v1253 = vrot.slane %v1251, 4
    %v1254 = vrot.slane %v1252, 3
    %v1255 = vsel %vm559, %v1254, %v1253
    %v1256 = vpack.c.b16 %v1255, %v1255
    %1258 = vmatprep.subr.bf16.mxu0 %v335
    %1259 = vmatpush1.bf16.msra.mxu0 %v334
    %1260 = vmatprep.subr.bf16.mxu0 %v339
    %1261 = vmatpush1.bf16.msra.mxu0 %v338
    %1262 = vmatprep.subr.bf16.mxu0 %v343
    %1263 = vmatpush1.bf16.msra.mxu0 %v342
    %1264 = vmatprep.subr.bf16.mxu0 %v347
    %1265 = vmatpush1.bf16.msra.mxu0 %v346
    %1266 = vmatprep.subr.bf16.mxu0 %v351
    %1267 = vmatpush1.bf16.msra.mxu0 %v350
    %1268 = vmatprep.subr.bf16.mxu0 %v355
    %1269 = vmatpush1.bf16.msra.mxu0 %v354
    %1270 = vmatprep.subr.bf16.mxu0 %v359
    %1271 = vmatpush1.bf16.msra.mxu0 %v358
    %1272 = vmatprep.subr.bf16.mxu0 %v363
    %1273 = vmatpush1.bf16.msra.mxu0 %v362
    %1274 = vmatprep.subr.bf16.mxu0 0
    %1275 = vmatpush1.bf16.msra.mxu0 0
    %1276 = vmatprep.subr.bf16.mxu0 0
    %1277 = vmatpush1.bf16.msra.mxu0 0
    %1278 = vmatprep.subr.bf16.mxu0 0
    %1279 = vmatpush1.bf16.msra.mxu0 0
    %1280 = vmatprep.subr.bf16.mxu0 0
    %1281 = vmatpush1.bf16.msra.mxu0 0
    %1282 = vmatprep.subr.bf16.mxu0 0
    %1283 = vmatpush1.bf16.msra.mxu0 0
    %1284 = vmatprep.subr.bf16.mxu0 0
    %1285 = vmatpush1.bf16.msra.mxu0 0
    %1286 = vmatprep.subr.bf16.mxu0 0
    %1287 = vmatpush1.bf16.msra.mxu0 0
    %1288 = vmatprep.subr.bf16.mxu0 0
    %1289 = vmatpush1.bf16.msra.mxu0 0
    %1290 = vmatprep.mubr.bf16.mxu0 0
    %1291 = vmatmul.mubr.bf16.gmra.mrb[0].mxu0 %v1256
    %v1292 = vpop.f32.mrb[0].mxu0
    %v1293 = vadd.f32 0.0, %v1292
    %v1294 = vpop.f32.mrb[0].mxu0
    %v1295 = vadd.f32 0.0, %v1294
    %v1296 = vpop.f32.mrb[0].mxu0
    %v1297 = vpop.f32.mrb[0].mxu0
    %1298 = vdwg.mxu0
    %1299 = vmatprep.subr.bf16.mxu0 %v337
    %1300 = vmatpush1.bf16.msra.mxu0 %v336
    %1301 = vmatprep.subr.bf16.mxu0 %v341
    %1302 = vmatpush1.bf16.msra.mxu0 %v340
    %1303 = vmatprep.subr.bf16.mxu0 %v345
    %1304 = vmatpush1.bf16.msra.mxu0 %v344
    %1305 = vmatprep.subr.bf16.mxu0 %v349
    %1306 = vmatpush1.bf16.msra.mxu0 %v348
    %1307 = vmatprep.subr.bf16.mxu0 %v353
    %1308 = vmatpush1.bf16.msra.mxu0 %v352
    %1309 = vmatprep.subr.bf16.mxu0 %v357
    %1310 = vmatpush1.bf16.msra.mxu0 %v356
    %1311 = vmatprep.subr.bf16.mxu0 %v361
    %1312 = vmatpush1.bf16.msra.mxu0 %v360
    %1313 = vmatprep.subr.bf16.mxu0 %v365
    %1314 = vmatpush1.bf16.msra.mxu0 %v364
    %1315 = vmatprep.subr.bf16.mxu0 0
    %1316 = vmatpush1.bf16.msra.mxu0 0
    %1317 = vmatprep.subr.bf16.mxu0 0
    %1318 = vmatpush1.bf16.msra.mxu0 0
    %1319 = vmatprep.subr.bf16.mxu0 0
    %1320 = vmatpush1.bf16.msra.mxu0 0
    %1321 = vmatprep.subr.bf16.mxu0 0
    %1322 = vmatpush1.bf16.msra.mxu0 0
    %1323 = vmatprep.subr.bf16.mxu0 0
    %1324 = vmatpush1.bf16.msra.mxu0 0
    %1325 = vmatprep.subr.bf16.mxu0 0
    %1326 = vmatpush1.bf16.msra.mxu0 0
    %1327 = vmatprep.subr.bf16.mxu0 0
    %1328 = vmatpush1.bf16.msra.mxu0 0
    %1329 = vmatprep.subr.bf16.mxu0 0
    %1330 = vmatpush1.bf16.msra.mxu0 0
    %1331 = vmatprep.mubr.bf16.mxu0 0
    %1332 = vmatmul.mubr.bf16.gmra.mrb[0].mxu0 %v1256
    %v1333 = vpop.f32.mrb[0].mxu0
    %v1334 = vadd.f32 0.0, %v1333
    %v1335 = vpop.f32.mrb[0].mxu0
    %v1336 = vadd.f32 0.0, %v1335
    %v1337 = vpop.f32.mrb[0].mxu0
    %v1338 = vpop.f32.mrb[0].mxu0
    %1339 = vdwg.mxu0
    %v1344 = vrot.slane %v1293, 3
    %v1345 = vrot.slane %v1295, 3
    %v1346 = vrot.slane %v1334, 3
    %v1347 = vrot.slane %v1336, 3
    %v1348 = vrot.slane %v1293, 4
    %v1349 = vrot.slane %v1295, 4
    %v1350 = vrot.slane %v1334, 4
    %v1351 = vrot.slane %v1336, 4
    %v1360 = vadd.f32 %v198, %v1344
    %v1361 = vadd.f32 %v199, %v1345
    %v1362 = vadd.f32 %v200, %v1346
    %v1363 = vadd.f32 %v201, %v1347
    %v1364 = vadd.f32 %v202, %v1348
    %v1365 = vadd.f32 %v203, %v1349
    %v1366 = vadd.f32 %v204, %v1350
    %v1367 = vadd.f32 %v205, %v1351
    %v1368 = vxor.u32 %v1360, 2147483648
    %v1369 = vxor.u32 %v1364, 2147483648
    %v1370 = vmul.f32 %v1368, 1.442695
    %v1371 = vpow.pop %v1370
    %v1372 = vmul.f32 %v1369, 1.442695
    %v1373 = vpow.pop %v1372
    %v1374 = vadd.f32 %v1371, 1.0
    %v1375 = vadd.f32 %v1373, 1.0
    %v1376 = vrcp.pop %v1374
    %v1377 = vmul.f32 1.0, %v1376
    %v1378 = vrcp.pop %v1375
    %v1379 = vmul.f32 1.0, %v1378
    %v1380 = vxor.u32 %v1361, 2147483648
    %v1381 = vxor.u32 %v1365, 2147483648
    %v1382 = vmul.f32 %v1380, 1.442695
    %v1383 = vpow.pop %v1382
    %v1384 = vmul.f32 %v1381, 1.442695
    %v1385 = vpow.pop %v1384
    %v1386 = vadd.f32 %v1383, 1.0
    %v1387 = vadd.f32 %v1385, 1.0
    %v1388 = vrcp.pop %v1386
    %v1389 = vmul.f32 1.0, %v1388
    %v1390 = vrcp.pop %v1387
    %v1391 = vmul.f32 1.0, %v1390
    %v1392 = vtanh.pop %v1362
    %v1393 = vtanh.pop %v1366
    %v1394 = vxor.u32 %v1363, 2147483648
    %v1395 = vxor.u32 %v1367, 2147483648
    %v1396 = vmul.f32 %v1394, 1.442695
    %v1397 = vpow.pop %v1396
    %v1398 = vmul.f32 %v1395, 1.442695
    %v1399 = vpow.pop %v1398
    %v1400 = vadd.f32 %v1397, 1.0
    %v1401 = vadd.f32 %v1399, 1.0
    %v1402 = vrcp.pop %v1400
    %v1403 = vmul.f32 1.0, %v1402
    %v1404 = vrcp.pop %v1401
    %v1405 = vmul.f32 1.0, %v1404
    %v1408 = vrot.slane %v1241, 7
    %v1409 = vrot.slane %v1242, 7
    %v1412 = vmul.f32 %v1389, %v1408
    %v1413 = vmul.f32 %v1391, %v1409
    %v1414 = vmul.f32 %v1377, %v1392
    %v1415 = vmul.f32 %v1379, %v1393
    %v1416 = vadd.f32 %v1412, %v1414
    %v1417 = vadd.f32 %v1413, %v1415
    %v1418 = vtanh.pop %v1416
    %v1419 = vtanh.pop %v1417
    %v1420 = vmul.f32 %v1403, %v1418
    %v1421 = vmul.f32 %v1405, %v1419
    %v1422 = vpack.c.bf16 %v1420, %v1420
    %v1423 = vpack.c.bf16 %v1421, %v1421
    %v1426 = vunpack.c.l.b16 %v1422
    %v1427 = vunpack.c.l.b16 %v1423
    %v1428 = vrot.slane %v1426, 5
    %v1429 = vrot.slane %v1427, 4
    %v1430 = vsel %vm559, %v1429, %v1428
    %v1431 = vpack.c.b16 %v1430, %v1430
    %1433 = vmatprep.subr.bf16.mxu0 %v335
    %1434 = vmatpush1.bf16.msra.mxu0 %v334
    %1435 = vmatprep.subr.bf16.mxu0 %v339
    %1436 = vmatpush1.bf16.msra.mxu0 %v338
    %1437 = vmatprep.subr.bf16.mxu0 %v343
    %1438 = vmatpush1.bf16.msra.mxu0 %v342
    %1439 = vmatprep.subr.bf16.mxu0 %v347
    %1440 = vmatpush1.bf16.msra.mxu0 %v346
    %1441 = vmatprep.subr.bf16.mxu0 %v351
    %1442 = vmatpush1.bf16.msra.mxu0 %v350
    %1443 = vmatprep.subr.bf16.mxu0 %v355
    %1444 = vmatpush1.bf16.msra.mxu0 %v354
    %1445 = vmatprep.subr.bf16.mxu0 %v359
    %1446 = vmatpush1.bf16.msra.mxu0 %v358
    %1447 = vmatprep.subr.bf16.mxu0 %v363
    %1448 = vmatpush1.bf16.msra.mxu0 %v362
    %1449 = vmatprep.subr.bf16.mxu0 0
    %1450 = vmatpush1.bf16.msra.mxu0 0
    %1451 = vmatprep.subr.bf16.mxu0 0
    %1452 = vmatpush1.bf16.msra.mxu0 0
    %1453 = vmatprep.subr.bf16.mxu0 0
    %1454 = vmatpush1.bf16.msra.mxu0 0
    %1455 = vmatprep.subr.bf16.mxu0 0
    %1456 = vmatpush1.bf16.msra.mxu0 0
    %1457 = vmatprep.subr.bf16.mxu0 0
    %1458 = vmatpush1.bf16.msra.mxu0 0
    %1459 = vmatprep.subr.bf16.mxu0 0
    %1460 = vmatpush1.bf16.msra.mxu0 0
    %1461 = vmatprep.subr.bf16.mxu0 0
    %1462 = vmatpush1.bf16.msra.mxu0 0
    %1463 = vmatprep.subr.bf16.mxu0 0
    %1464 = vmatpush1.bf16.msra.mxu0 0
    %1465 = vmatprep.mubr.bf16.mxu0 0
    %1466 = vmatmul.mubr.bf16.gmra.mrb[0].mxu0 %v1431
    %v1467 = vpop.f32.mrb[0].mxu0
    %v1468 = vadd.f32 0.0, %v1467
    %v1469 = vpop.f32.mrb[0].mxu0
    %v1470 = vadd.f32 0.0, %v1469
    %v1471 = vpop.f32.mrb[0].mxu0
    %v1472 = vpop.f32.mrb[0].mxu0
    %1473 = vdwg.mxu0
    %1474 = vmatprep.subr.bf16.mxu0 %v337
    %1475 = vmatpush1.bf16.msra.mxu0 %v336
    %1476 = vmatprep.subr.bf16.mxu0 %v341
    %1477 = vmatpush1.bf16.msra.mxu0 %v340
    %1478 = vmatprep.subr.bf16.mxu0 %v345
    %1479 = vmatpush1.bf16.msra.mxu0 %v344
    %1480 = vmatprep.subr.bf16.mxu0 %v349
    %1481 = vmatpush1.bf16.msra.mxu0 %v348
    %1482 = vmatprep.subr.bf16.mxu0 %v353
    %1483 = vmatpush1.bf16.msra.mxu0 %v352
    %1484 = vmatprep.subr.bf16.mxu0 %v357
    %1485 = vmatpush1.bf16.msra.mxu0 %v356
    %1486 = vmatprep.subr.bf16.mxu0 %v361
    %1487 = vmatpush1.bf16.msra.mxu0 %v360
    %1488 = vmatprep.subr.bf16.mxu0 %v365
    %1489 = vmatpush1.bf16.msra.mxu0 %v364
    %1490 = vmatprep.subr.bf16.mxu0 0
    %1491 = vmatpush1.bf16.msra.mxu0 0
    %1492 = vmatprep.subr.bf16.mxu0 0
    %1493 = vmatpush1.bf16.msra.mxu0 0
    %1494 = vmatprep.subr.bf16.mxu0 0
    %1495 = vmatpush1.bf16.msra.mxu0 0
    %1496 = vmatprep.subr.bf16.mxu0 0
    %1497 = vmatpush1.bf16.msra.mxu0 0
    %1498 = vmatprep.subr.bf16.mxu0 0
    %1499 = vmatpush1.bf16.msra.mxu0 0
    %1500 = vmatprep.subr.bf16.mxu0 0
    %1501 = vmatpush1.bf16.msra.mxu0 0
    %1502 = vmatprep.subr.bf16.mxu0 0
    %1503 = vmatpush1.bf16.msra.mxu0 0
    %1504 = vmatprep.subr.bf16.mxu0 0
    %1505 = vmatpush1.bf16.msra.mxu0 0
    %1506 = vmatprep.mubr.bf16.mxu0 0
    %1507 = vmatmul.mubr.bf16.gmra.mrb[0].mxu0 %v1431
    %v1508 = vpop.f32.mrb[0].mxu0
    %v1509 = vadd.f32 0.0, %v1508
    %v1510 = vpop.f32.mrb[0].mxu0
    %v1511 = vadd.f32 0.0, %v1510
    %v1512 = vpop.f32.mrb[0].mxu0
    %v1513 = vpop.f32.mrb[0].mxu0
    %1514 = vdwg.mxu0
    %v1519 = vrot.slane %v1468, 2
    %v1520 = vrot.slane %v1470, 2
    %v1521 = vrot.slane %v1509, 2
    %v1522 = vrot.slane %v1511, 2
    %v1523 = vrot.slane %v1468, 3
    %v1524 = vrot.slane %v1470, 3
    %v1525 = vrot.slane %v1509, 3
    %v1526 = vrot.slane %v1511, 3
    %v1535 = vadd.f32 %v198, %v1519
    %v1536 = vadd.f32 %v199, %v1520
    %v1537 = vadd.f32 %v200, %v1521
    %v1538 = vadd.f32 %v201, %v1522
    %v1539 = vadd.f32 %v202, %v1523
    %v1540 = vadd.f32 %v203, %v1524
    %v1541 = vadd.f32 %v204, %v1525
    %v1542 = vadd.f32 %v205, %v1526
    %v1543 = vxor.u32 %v1535, 2147483648
    %v1544 = vxor.u32 %v1539, 2147483648
    %v1545 = vmul.f32 %v1543, 1.442695
    %v1546 = vpow.pop %v1545
    %v1547 = vmul.f32 %v1544, 1.442695
    %v1548 = vpow.pop %v1547
    %v1549 = vadd.f32 %v1546, 1.0
    %v1550 = vadd.f32 %v1548, 1.0
    %v1551 = vrcp.pop %v1549
    %v1552 = vmul.f32 1.0, %v1551
    %v1553 = vrcp.pop %v1550
    %v1554 = vmul.f32 1.0, %v1553
    %v1555 = vxor.u32 %v1536, 2147483648
    %v1556 = vxor.u32 %v1540, 2147483648
    %v1557 = vmul.f32 %v1555, 1.442695
    %v1558 = vpow.pop %v1557
    %v1559 = vmul.f32 %v1556, 1.442695
    %v1560 = vpow.pop %v1559
    %v1561 = vadd.f32 %v1558, 1.0
    %v1562 = vadd.f32 %v1560, 1.0
    %v1563 = vrcp.pop %v1561
    %v1564 = vmul.f32 1.0, %v1563
    %v1565 = vrcp.pop %v1562
    %v1566 = vmul.f32 1.0, %v1565
    %v1567 = vtanh.pop %v1537
    %v1568 = vtanh.pop %v1541
    %v1569 = vxor.u32 %v1538, 2147483648
    %v1570 = vxor.u32 %v1542, 2147483648
    %v1571 = vmul.f32 %v1569, 1.442695
    %v1572 = vpow.pop %v1571
    %v1573 = vmul.f32 %v1570, 1.442695
    %v1574 = vpow.pop %v1573
    %v1575 = vadd.f32 %v1572, 1.0
    %v1576 = vadd.f32 %v1574, 1.0
    %v1577 = vrcp.pop %v1575
    %v1578 = vmul.f32 1.0, %v1577
    %v1579 = vrcp.pop %v1576
    %v1580 = vmul.f32 1.0, %v1579
    %v1583 = vrot.slane %v1416, 7
    %v1584 = vrot.slane %v1417, 7
    %v1587 = vmul.f32 %v1564, %v1583
    %v1588 = vmul.f32 %v1566, %v1584
    %v1589 = vmul.f32 %v1552, %v1567
    %v1590 = vmul.f32 %v1554, %v1568
    %v1591 = vadd.f32 %v1587, %v1589
    %v1592 = vadd.f32 %v1588, %v1590
    %v1593 = vtanh.pop %v1591
    %v1594 = vtanh.pop %v1592
    %v1595 = vmul.f32 %v1578, %v1593
    %v1596 = vmul.f32 %v1580, %v1594
    %v1597 = vpack.c.bf16 %v1595, %v1595
    %v1598 = vpack.c.bf16 %v1596, %v1596
    %v1601 = vunpack.c.l.b16 %v1597
    %v1602 = vunpack.c.l.b16 %v1598
    %v1603 = vrot.slane %v1601, 6
    %v1604 = vrot.slane %v1602, 5
    %v1605 = vsel %vm559, %v1604, %v1603
    %v1606 = vpack.c.b16 %v1605, %v1605
    %1608 = vmatprep.subr.bf16.mxu0 %v335
    %1609 = vmatpush1.bf16.msra.mxu0 %v334
    %1610 = vmatprep.subr.bf16.mxu0 %v339
    %1611 = vmatpush1.bf16.msra.mxu0 %v338
    %1612 = vmatprep.subr.bf16.mxu0 %v343
    %1613 = vmatpush1.bf16.msra.mxu0 %v342
    %1614 = vmatprep.subr.bf16.mxu0 %v347
    %1615 = vmatpush1.bf16.msra.mxu0 %v346
    %1616 = vmatprep.subr.bf16.mxu0 %v351
    %1617 = vmatpush1.bf16.msra.mxu0 %v350
    %1618 = vmatprep.subr.bf16.mxu0 %v355
    %1619 = vmatpush1.bf16.msra.mxu0 %v354
    %1620 = vmatprep.subr.bf16.mxu0 %v359
    %1621 = vmatpush1.bf16.msra.mxu0 %v358
    %1622 = vmatprep.subr.bf16.mxu0 %v363
    %1623 = vmatpush1.bf16.msra.mxu0 %v362
    %1624 = vmatprep.subr.bf16.mxu0 0
    %1625 = vmatpush1.bf16.msra.mxu0 0
    %1626 = vmatprep.subr.bf16.mxu0 0
    %1627 = vmatpush1.bf16.msra.mxu0 0
    %1628 = vmatprep.subr.bf16.mxu0 0
    %1629 = vmatpush1.bf16.msra.mxu0 0
    %1630 = vmatprep.subr.bf16.mxu0 0
    %1631 = vmatpush1.bf16.msra.mxu0 0
    %1632 = vmatprep.subr.bf16.mxu0 0
    %1633 = vmatpush1.bf16.msra.mxu0 0
    %1634 = vmatprep.subr.bf16.mxu0 0
    %1635 = vmatpush1.bf16.msra.mxu0 0
    %1636 = vmatprep.subr.bf16.mxu0 0
    %1637 = vmatpush1.bf16.msra.mxu0 0
    %1638 = vmatprep.subr.bf16.mxu0 0
    %1639 = vmatpush1.bf16.msra.mxu0 0
    %1640 = vmatprep.mubr.bf16.mxu0 0
    %1641 = vmatmul.mubr.bf16.gmra.mrb[0].mxu0 %v1606
    %v1642 = vpop.f32.mrb[0].mxu0
    %v1643 = vadd.f32 0.0, %v1642
    %v1644 = vpop.f32.mrb[0].mxu0
    %v1645 = vadd.f32 0.0, %v1644
    %v1646 = vpop.f32.mrb[0].mxu0
    %v1647 = vpop.f32.mrb[0].mxu0
    %1648 = vdwg.mxu0
    %1649 = vmatprep.subr.bf16.mxu0 %v337
    %1650 = vmatpush1.bf16.msra.mxu0 %v336
    %1651 = vmatprep.subr.bf16.mxu0 %v341
    %1652 = vmatpush1.bf16.msra.mxu0 %v340
    %1653 = vmatprep.subr.bf16.mxu0 %v345
    %1654 = vmatpush1.bf16.msra.mxu0 %v344
    %1655 = vmatprep.subr.bf16.mxu0 %v349
    %1656 = vmatpush1.bf16.msra.mxu0 %v348
    %1657 = vmatprep.subr.bf16.mxu0 %v353
    %1658 = vmatpush1.bf16.msra.mxu0 %v352
    %1659 = vmatprep.subr.bf16.mxu0 %v357
    %1660 = vmatpush1.bf16.msra.mxu0 %v356
    %1661 = vmatprep.subr.bf16.mxu0 %v361
    %1662 = vmatpush1.bf16.msra.mxu0 %v360
    %1663 = vmatprep.subr.bf16.mxu0 %v365
    %1664 = vmatpush1.bf16.msra.mxu0 %v364
    %1665 = vmatprep.subr.bf16.mxu0 0
    %1666 = vmatpush1.bf16.msra.mxu0 0
    %1667 = vmatprep.subr.bf16.mxu0 0
    %1668 = vmatpush1.bf16.msra.mxu0 0
    %1669 = vmatprep.subr.bf16.mxu0 0
    %1670 = vmatpush1.bf16.msra.mxu0 0
    %1671 = vmatprep.subr.bf16.mxu0 0
    %1672 = vmatpush1.bf16.msra.mxu0 0
    %1673 = vmatprep.subr.bf16.mxu0 0
    %1674 = vmatpush1.bf16.msra.mxu0 0
    %1675 = vmatprep.subr.bf16.mxu0 0
    %1676 = vmatpush1.bf16.msra.mxu0 0
    %1677 = vmatprep.subr.bf16.mxu0 0
    %1678 = vmatpush1.bf16.msra.mxu0 0
    %1679 = vmatprep.subr.bf16.mxu0 0
    %1680 = vmatpush1.bf16.msra.mxu0 0
    %1681 = vmatprep.mubr.bf16.mxu0 0
    %1682 = vmatmul.mubr.bf16.gmra.mrb[0].mxu0 %v1606
    %v1683 = vpop.f32.mrb[0].mxu0
    %v1684 = vadd.f32 0.0, %v1683
    %v1685 = vpop.f32.mrb[0].mxu0
    %v1686 = vadd.f32 0.0, %v1685
    %v1687 = vpop.f32.mrb[0].mxu0
    %v1688 = vpop.f32.mrb[0].mxu0
    %1689 = vdwg.mxu0
    %v1694 = vrot.slane %v1643, 1
    %v1695 = vrot.slane %v1645, 1
    %v1696 = vrot.slane %v1684, 1
    %v1697 = vrot.slane %v1686, 1
    %v1698 = vrot.slane %v1643, 2
    %v1699 = vrot.slane %v1645, 2
    %v1700 = vrot.slane %v1684, 2
    %v1701 = vrot.slane %v1686, 2
    %v1710 = vadd.f32 %v198, %v1694
    %v1711 = vadd.f32 %v199, %v1695
    %v1712 = vadd.f32 %v200, %v1696
    %v1713 = vadd.f32 %v201, %v1697
    %v1714 = vadd.f32 %v202, %v1698
    %v1715 = vadd.f32 %v203, %v1699
    %v1716 = vadd.f32 %v204, %v1700
    %v1717 = vadd.f32 %v205, %v1701
    %v1718 = vxor.u32 %v1710, 2147483648
    %v1719 = vxor.u32 %v1714, 2147483648
    %v1720 = vmul.f32 %v1718, 1.442695
    %v1721 = vpow.pop %v1720
    %v1722 = vmul.f32 %v1719, 1.442695
    %v1723 = vpow.pop %v1722
    %v1724 = vadd.f32 %v1721, 1.0
    %v1725 = vadd.f32 %v1723, 1.0
    %v1726 = vrcp.pop %v1724
    %v1727 = vmul.f32 1.0, %v1726
    %v1728 = vrcp.pop %v1725
    %v1729 = vmul.f32 1.0, %v1728
    %v1730 = vxor.u32 %v1711, 2147483648
    %v1731 = vxor.u32 %v1715, 2147483648
    %v1732 = vmul.f32 %v1730, 1.442695
    %v1733 = vpow.pop %v1732
    %v1734 = vmul.f32 %v1731, 1.442695
    %v1735 = vpow.pop %v1734
    %v1736 = vadd.f32 %v1733, 1.0
    %v1737 = vadd.f32 %v1735, 1.0
    %v1738 = vrcp.pop %v1736
    %v1739 = vmul.f32 1.0, %v1738
    %v1740 = vrcp.pop %v1737
    %v1741 = vmul.f32 1.0, %v1740
    %v1742 = vtanh.pop %v1712
    %v1743 = vtanh.pop %v1716
    %v1744 = vxor.u32 %v1713, 2147483648
    %v1745 = vxor.u32 %v1717, 2147483648
    %v1746 = vmul.f32 %v1744, 1.442695
    %v1747 = vpow.pop %v1746
    %v1748 = vmul.f32 %v1745, 1.442695
    %v1749 = vpow.pop %v1748
    %v1750 = vadd.f32 %v1747, 1.0
    %v1751 = vadd.f32 %v1749, 1.0
    %v1752 = vrcp.pop %v1750
    %v1753 = vmul.f32 1.0, %v1752
    %v1754 = vrcp.pop %v1751
    %v1755 = vmul.f32 1.0, %v1754
    %v1758 = vrot.slane %v1591, 7
    %v1759 = vrot.slane %v1592, 7
    %v1762 = vmul.f32 %v1739, %v1758
    %v1763 = vmul.f32 %v1741, %v1759
    %v1764 = vmul.f32 %v1727, %v1742
    %v1765 = vmul.f32 %v1729, %v1743
    %v1766 = vadd.f32 %v1762, %v1764
    %v1767 = vadd.f32 %v1763, %v1765
    %v1768 = vtanh.pop %v1766
    %v1769 = vtanh.pop %v1767
    %v1770 = vmul.f32 %v1753, %v1768
    %v1771 = vmul.f32 %v1755, %v1769
    %v1772 = vld [vmem:[%s6] sm:$0x1]
    %v1774 = vlaneseq
    %v1775 = vshrl.u32 %v1774, 7
    %v1776 = vsub.s32 0, %v1775
    %v1777 = vrot.slane %v1772, %v1776
    %v1779 = vsub.f32 %v1770, %v1777
    %v1780 = vsub.f32 %v1771, %v1777
    %v1781 = vld [vmem:[%s7] sm:$0x1]
    %v1782 = vadd.f32 %v1781, 1e-05
    %v1783 = vrsqrt.pop %v1782
    %v1785 = vlaneseq
    %v1786 = vshrl.u32 %v1785, 7
    %v1787 = vsub.s32 0, %v1786
    %v1788 = vrot.slane %v1783, %v1787
    %v1790 = vmul.f32 %v1779, %v1788
    %v1791 = vmul.f32 %v1780, %v1788
    %v1792 = vld [vmem:[%s4] sm:$0x1]
    %v1794 = vlaneseq
    %v1795 = vshrl.u32 %v1794, 7
    %v1796 = vsub.s32 0, %v1795
    %v1797 = vrot.slane %v1792, %v1796
    %v1799 = vmul.f32 %v1790, %v1797
    %v1800 = vmul.f32 %v1791, %v1797
    %v1801 = vld [vmem:[%s5] sm:$0x1]
    %v1803 = vlaneseq
    %v1804 = vshrl.u32 %v1803, 7
    %v1805 = vsub.s32 0, %v1804
    %v1806 = vrot.slane %v1801, %v1805
    %v1808 = vadd.f32 %v1799, %v1806
    %v1809 = vadd.f32 %v1800, %v1806
    %v1810 = vpack.c.bf16 %v1808, %v1808
    %v1811 = vpack.c.bf16 %v1809, %v1809
    %v1812 = vld [vmem:[%s8] sm:$0xff]
    %v1813 = vld [vmem:[%s8 + $0x8] sm:$0xff]
    %v1814 = vld [vmem:[%s8 + $0x10] sm:$0xff]
    %v1815 = vld [vmem:[%s8 + $0x18] sm:$0xff]
    %v1816 = vld [vmem:[%s8 + $0x20] sm:$0xff]
    %v1817 = vld [vmem:[%s8 + $0x28] sm:$0xff]
    %v1818 = vld [vmem:[%s8 + $0x30] sm:$0xff]
    %v1819 = vld [vmem:[%s8 + $0x38] sm:$0xff]
    %v1820 = vld [vmem:[%s8 + $0x40] sm:$0xff]
    %v1821 = vld [vmem:[%s8 + $0x48] sm:$0xff]
    %v1822 = vld [vmem:[%s8 + $0x50] sm:$0xff]
    %v1823 = vld [vmem:[%s8 + $0x58] sm:$0xff]
    %v1824 = vld [vmem:[%s8 + $0x60] sm:$0xff]
    %v1825 = vld [vmem:[%s8 + $0x68] sm:$0xff]
    %v1826 = vld [vmem:[%s8 + $0x70] sm:$0xff]
    %v1827 = vld [vmem:[%s8 + $0x78] sm:$0xff]
    %v1828 = vld [vmem:[%s8 + $0x80] sm:$0xff]
    %v1829 = vld [vmem:[%s8 + $0x88] sm:$0xff]
    %v1830 = vld [vmem:[%s8 + $0x90] sm:$0xff]
    %v1831 = vld [vmem:[%s8 + $0x98] sm:$0xff]
    %v1832 = vld [vmem:[%s8 + $0xa0] sm:$0xff]
    %v1833 = vld [vmem:[%s8 + $0xa8] sm:$0xff]
    %v1834 = vld [vmem:[%s8 + $0xb0] sm:$0xff]
    %v1835 = vld [vmem:[%s8 + $0xb8] sm:$0xff]
    %v1836 = vld [vmem:[%s8 + $0xc0] sm:$0xff]
    %v1837 = vld [vmem:[%s8 + $0xc8] sm:$0xff]
    %v1838 = vld [vmem:[%s8 + $0xd0] sm:$0xff]
    %v1839 = vld [vmem:[%s8 + $0xd8] sm:$0xff]
    %v1840 = vld [vmem:[%s8 + $0xe0] sm:$0xff]
    %v1841 = vld [vmem:[%s8 + $0xe8] sm:$0xff]
    %v1842 = vld [vmem:[%s8 + $0xf0] sm:$0xff]
    %v1843 = vld [vmem:[%s8 + $0xf8] sm:$0xff]
    %v1844 = vld [vmem:[%s9] sm:$0xf]
    %v1846 = vlaneseq
    %v1847 = vshrl.u32 %v1846, 7
    %v1848 = vsub.s32 0, %v1847
    %v1849 = vrot.slane %v1844, %v1848
    %v1850 = vlaneseq
    %v1851 = vshrl.u32 %v1850, 7
    %v1852 = vsub.s32 2, %v1851
    %v1853 = vrot.slane %v1844, %v1852
    %v1854 = vlaneseq
    %v1855 = vshrl.u32 %v1854, 7
    %v1856 = vsub.s32 3, %v1855
    %v1857 = vrot.slane %v1844, %v1856
    %v1863 = vunpack.c.l.b16 %v1810
    %v1864 = vunpack.c.l.b16 %v1811
    %v1865 = vrot.slane %v1863, 7
    %v1866 = vrot.slane %v1864, 6
    %v1867 = vsel %vm559, %v1866, %v1865
    %v1868 = vpack.c.b16 %v1867, %v1867
    %v1902 = vunpack.c.l.b16 %v1812
    %v1903 = vunpack.c.h.b16 %v1812
    %v1904 = vunpack.c.l.b16 %v1813
    %v1905 = vunpack.c.h.b16 %v1813
    %v1906 = vunpack.c.l.b16 %v1814
    %v1907 = vunpack.c.h.b16 %v1814
    %v1908 = vunpack.c.l.b16 %v1815
    %v1909 = vunpack.c.h.b16 %v1815
    %v1910 = vunpack.c.l.b16 %v1816
    %v1911 = vunpack.c.h.b16 %v1816
    %v1912 = vunpack.c.l.b16 %v1817
    %v1913 = vunpack.c.h.b16 %v1817
    %v1914 = vunpack.c.l.b16 %v1818
    %v1915 = vunpack.c.h.b16 %v1818
    %v1916 = vunpack.c.l.b16 %v1819
    %v1917 = vunpack.c.h.b16 %v1819
    %v1918 = vunpack.c.l.b16 %v1820
    %v1919 = vunpack.c.h.b16 %v1820
    %v1920 = vunpack.c.l.b16 %v1821
    %v1921 = vunpack.c.h.b16 %v1821
    %v1922 = vunpack.c.l.b16 %v1822
    %v1923 = vunpack.c.h.b16 %v1822
    %v1924 = vunpack.c.l.b16 %v1823
    %v1925 = vunpack.c.h.b16 %v1823
    %v1926 = vunpack.c.l.b16 %v1824
    %v1927 = vunpack.c.h.b16 %v1824
    %v1928 = vunpack.c.l.b16 %v1825
    %v1929 = vunpack.c.h.b16 %v1825
    %v1930 = vunpack.c.l.b16 %v1826
    %v1931 = vunpack.c.h.b16 %v1826
    %v1932 = vunpack.c.l.b16 %v1827
    %v1933 = vunpack.c.h.b16 %v1827
    %v1934 = vunpack.c.l.b16 %v1828
    %v1935 = vunpack.c.h.b16 %v1828
    %v1936 = vunpack.c.l.b16 %v1829
    %v1937 = vunpack.c.h.b16 %v1829
    %v1938 = vunpack.c.l.b16 %v1830
    %v1939 = vunpack.c.h.b16 %v1830
    %v1940 = vunpack.c.l.b16 %v1831
    %v1941 = vunpack.c.h.b16 %v1831
    %v1942 = vunpack.c.l.b16 %v1832
    %v1943 = vunpack.c.h.b16 %v1832
    %v1944 = vunpack.c.l.b16 %v1833
    %v1945 = vunpack.c.h.b16 %v1833
    %v1946 = vunpack.c.l.b16 %v1834
    %v1947 = vunpack.c.h.b16 %v1834
    %v1948 = vunpack.c.l.b16 %v1835
    %v1949 = vunpack.c.h.b16 %v1835
    %v1950 = vunpack.c.l.b16 %v1836
    %v1951 = vunpack.c.h.b16 %v1836
    %v1952 = vunpack.c.l.b16 %v1837
    %v1953 = vunpack.c.h.b16 %v1837
    %v1954 = vunpack.c.l.b16 %v1838
    %v1955 = vunpack.c.h.b16 %v1838
    %v1956 = vunpack.c.l.b16 %v1839
    %v1957 = vunpack.c.h.b16 %v1839
    %v1958 = vunpack.c.l.b16 %v1840
    %v1959 = vunpack.c.h.b16 %v1840
    %v1960 = vunpack.c.l.b16 %v1841
    %v1961 = vunpack.c.h.b16 %v1841
    %v1962 = vunpack.c.l.b16 %v1842
    %v1963 = vunpack.c.h.b16 %v1842
    %v1964 = vunpack.c.l.b16 %v1843
    %v1965 = vunpack.c.h.b16 %v1843
    %v1966 = vpack.c.b16 %v1906, %v1902
    %v1967 = vpack.c.b16 %v1907, %v1903
    %v1968 = vpack.c.b16 %v1908, %v1904
    %v1969 = vpack.c.b16 %v1909, %v1905
    %v1970 = vpack.c.b16 %v1914, %v1910
    %v1971 = vpack.c.b16 %v1915, %v1911
    %v1972 = vpack.c.b16 %v1916, %v1912
    %v1973 = vpack.c.b16 %v1917, %v1913
    %v1974 = vpack.c.b16 %v1922, %v1918
    %v1975 = vpack.c.b16 %v1923, %v1919
    %v1976 = vpack.c.b16 %v1924, %v1920
    %v1977 = vpack.c.b16 %v1925, %v1921
    %v1978 = vpack.c.b16 %v1930, %v1926
    %v1979 = vpack.c.b16 %v1931, %v1927
    %v1980 = vpack.c.b16 %v1932, %v1928
    %v1981 = vpack.c.b16 %v1933, %v1929
    %v1982 = vpack.c.b16 %v1938, %v1934
    %v1983 = vpack.c.b16 %v1939, %v1935
    %v1984 = vpack.c.b16 %v1940, %v1936
    %v1985 = vpack.c.b16 %v1941, %v1937
    %v1986 = vpack.c.b16 %v1946, %v1942
    %v1987 = vpack.c.b16 %v1947, %v1943
    %v1988 = vpack.c.b16 %v1948, %v1944
    %v1989 = vpack.c.b16 %v1949, %v1945
    %v1990 = vpack.c.b16 %v1954, %v1950
    %v1991 = vpack.c.b16 %v1955, %v1951
    %v1992 = vpack.c.b16 %v1956, %v1952
    %v1993 = vpack.c.b16 %v1957, %v1953
    %v1994 = vpack.c.b16 %v1962, %v1958
    %v1995 = vpack.c.b16 %v1963, %v1959
    %v1996 = vpack.c.b16 %v1964, %v1960
    %v1997 = vpack.c.b16 %v1965, %v1961
    %2030 = vmatprep.subr.bf16.mxu0 %v1967
    %2031 = vmatpush1.bf16.msra.mxu0 %v1966
    %2032 = vmatprep.subr.bf16.mxu0 %v1971
    %2033 = vmatpush1.bf16.msra.mxu0 %v1970
    %2034 = vmatprep.subr.bf16.mxu0 %v1975
    %2035 = vmatpush1.bf16.msra.mxu0 %v1974
    %2036 = vmatprep.subr.bf16.mxu0 %v1979
    %2037 = vmatpush1.bf16.msra.mxu0 %v1978
    %2038 = vmatprep.subr.bf16.mxu0 %v1983
    %2039 = vmatpush1.bf16.msra.mxu0 %v1982
    %2040 = vmatprep.subr.bf16.mxu0 %v1987
    %2041 = vmatpush1.bf16.msra.mxu0 %v1986
    %2042 = vmatprep.subr.bf16.mxu0 %v1991
    %2043 = vmatpush1.bf16.msra.mxu0 %v1990
    %2044 = vmatprep.subr.bf16.mxu0 %v1995
    %2045 = vmatpush1.bf16.msra.mxu0 %v1994
    %2046 = vmatprep.subr.bf16.mxu0 0
    %2047 = vmatpush1.bf16.msra.mxu0 0
    %2048 = vmatprep.subr.bf16.mxu0 0
    %2049 = vmatpush1.bf16.msra.mxu0 0
    %2050 = vmatprep.subr.bf16.mxu0 0
    %2051 = vmatpush1.bf16.msra.mxu0 0
    %2052 = vmatprep.subr.bf16.mxu0 0
    %2053 = vmatpush1.bf16.msra.mxu0 0
    %2054 = vmatprep.subr.bf16.mxu0 0
    %2055 = vmatpush1.bf16.msra.mxu0 0
    %2056 = vmatprep.subr.bf16.mxu0 0
    %2057 = vmatpush1.bf16.msra.mxu0 0
    %2058 = vmatprep.subr.bf16.mxu0 0
    %2059 = vmatpush1.bf16.msra.mxu0 0
    %2060 = vmatprep.subr.bf16.mxu0 0
    %2061 = vmatpush1.bf16.msra.mxu0 0
    %2062 = vmatprep.mubr.bf16.mxu0 0
    %2063 = vmatmul.mubr.bf16.gmra.mrb[0].mxu0 %v1868
    %v2064 = vpop.f32.mrb[0].mxu0
    %v2065 = vadd.f32 %v1849, %v2064
    %v2066 = vpop.f32.mrb[0].mxu0
    %v2067 = vpop.f32.mrb[0].mxu0
    %v2068 = vpop.f32.mrb[0].mxu0
    %2069 = vdwg.mxu0
    %2070 = vmatprep.subr.bf16.mxu0 %v1969
    %2071 = vmatpush1.bf16.msra.mxu0 %v1968
    %2072 = vmatprep.subr.bf16.mxu0 %v1973
    %2073 = vmatpush1.bf16.msra.mxu0 %v1972
    %2074 = vmatprep.subr.bf16.mxu0 %v1977
    %2075 = vmatpush1.bf16.msra.mxu0 %v1976
    %2076 = vmatprep.subr.bf16.mxu0 %v1981
    %2077 = vmatpush1.bf16.msra.mxu0 %v1980
    %2078 = vmatprep.subr.bf16.mxu0 %v1985
    %2079 = vmatpush1.bf16.msra.mxu0 %v1984
    %2080 = vmatprep.subr.bf16.mxu0 %v1989
    %2081 = vmatpush1.bf16.msra.mxu0 %v1988
    %2082 = vmatprep.subr.bf16.mxu0 %v1993
    %2083 = vmatpush1.bf16.msra.mxu0 %v1992
    %2084 = vmatprep.subr.bf16.mxu0 %v1997
    %2085 = vmatpush1.bf16.msra.mxu0 %v1996
    %2086 = vmatprep.subr.bf16.mxu0 0
    %2087 = vmatpush1.bf16.msra.mxu0 0
    %2088 = vmatprep.subr.bf16.mxu0 0
    %2089 = vmatpush1.bf16.msra.mxu0 0
    %2090 = vmatprep.subr.bf16.mxu0 0
    %2091 = vmatpush1.bf16.msra.mxu0 0
    %2092 = vmatprep.subr.bf16.mxu0 0
    %2093 = vmatpush1.bf16.msra.mxu0 0
    %2094 = vmatprep.subr.bf16.mxu0 0
    %2095 = vmatpush1.bf16.msra.mxu0 0
    %2096 = vmatprep.subr.bf16.mxu0 0
    %2097 = vmatpush1.bf16.msra.mxu0 0
    %2098 = vmatprep.subr.bf16.mxu0 0
    %2099 = vmatpush1.bf16.msra.mxu0 0
    %2100 = vmatprep.subr.bf16.mxu0 0
    %2101 = vmatpush1.bf16.msra.mxu0 0
    %2102 = vmatprep.mubr.bf16.mxu0 0
    %2103 = vmatmul.mubr.bf16.gmra.mrb[0].mxu0 %v1868
    %v2104 = vpop.f32.mrb[0].mxu0
    %v2105 = vadd.f32 %v1853, %v2104
    %v2106 = vpop.f32.mrb[0].mxu0
    %v2107 = vadd.f32 %v1857, %v2106
    %v2108 = vpop.f32.mrb[0].mxu0
    %v2109 = vpop.f32.mrb[0].mxu0
    %2110 = vdwg.mxu0
    %v2111 = vxor.u32 %v2065, 2147483648
    %v2112 = vmul.f32 %v2111, 1.442695
    %v2113 = vpow.pop %v2112
    %v2114 = vadd.f32 %v2113, 1.0
    %v2115 = vrcp.pop %v2114
    %v2116 = vmul.f32 1.0, %v2115
    %v2117 = vtanh.pop %v2105
    %v2118 = vxor.u32 %v2107, 2147483648
    %v2119 = vmul.f32 %v2118, 1.442695
    %v2120 = vpow.pop %v2119
    %v2121 = vadd.f32 %v2120, 1.0
    %v2122 = vrcp.pop %v2121
    %v2123 = vmul.f32 1.0, %v2122
    %v2124 = vmul.f32 %v2116, %v2117
    %v2125 = vtanh.pop %v2124
    %v2126 = vmul.f32 %v2123, %v2125
    %v2127 = vld [vmem:[%s12] sm:$0x1]
    %v2129 = vlaneseq
    %v2130 = vshrl.u32 %v2129, 7
    %v2131 = vsub.s32 0, %v2130
    %v2132 = vrot.slane %v2127, %v2131
    %v2134 = vsub.f32 %v2126, %v2132
    %v2135 = vld [vmem:[%s13] sm:$0x1]
    %v2136 = vadd.f32 %v2135, 1e-05
    %v2137 = vrsqrt.pop %v2136
    %v2139 = vlaneseq
    %v2140 = vshrl.u32 %v2139, 7
    %v2141 = vsub.s32 0, %v2140
    %v2142 = vrot.slane %v2137, %v2141
    %v2144 = vmul.f32 %v2134, %v2142
    %v2145 = vld [vmem:[%s10] sm:$0x1]
    %v2147 = vlaneseq
    %v2148 = vshrl.u32 %v2147, 7
    %v2149 = vsub.s32 0, %v2148
    %v2150 = vrot.slane %v2145, %v2149
    %v2152 = vmul.f32 %v2144, %v2150
    %v2153 = vld [vmem:[%s11] sm:$0x1]
    %v2155 = vlaneseq
    %v2156 = vshrl.u32 %v2155, 7
    %v2157 = vsub.s32 0, %v2156
    %v2158 = vrot.slane %v2153, %v2157
    %v2160 = vadd.f32 %v2152, %v2158
    %v2161 = vpack.c.bf16 %v2160, %v2160
    %v2162 = vld [vmem:[%s14] sm:$0xf]
    %v2163 = vld [vmem:[%s14 + $0x4] sm:$0xf]
    %v2164 = vld [vmem:[%s14 + $0x8] sm:$0xf]
    %v2165 = vld [vmem:[%s14 + $0xc] sm:$0xf]
    %v2166 = vld [vmem:[%s14 + $0x10] sm:$0xf]
    %v2167 = vld [vmem:[%s14 + $0x14] sm:$0xf]
    %v2168 = vld [vmem:[%s14 + $0x18] sm:$0xf]
    %v2169 = vld [vmem:[%s14 + $0x1c] sm:$0xf]
    %v2170 = vld [vmem:[%s14 + $0x20] sm:$0xf]
    %v2171 = vld [vmem:[%s14 + $0x24] sm:$0xf]
    %v2172 = vld [vmem:[%s14 + $0x28] sm:$0xf]
    %v2173 = vld [vmem:[%s14 + $0x2c] sm:$0xf]
    %v2174 = vld [vmem:[%s14 + $0x30] sm:$0xf]
    %v2175 = vld [vmem:[%s14 + $0x34] sm:$0xf]
    %v2176 = vld [vmem:[%s14 + $0x38] sm:$0xf]
    %v2177 = vld [vmem:[%s14 + $0x3c] sm:$0xf]
    %v2178 = vld [vmem:[%s15] sm:$0x1]
    %v2180 = vlaneseq
    %v2181 = vshrl.u32 %v2180, 7
    %v2182 = vsub.s32 0, %v2181
    %v2183 = vrot.slane %v2178, %v2182
    %v2201 = vunpack.c.l.b16 %v2162
    %v2202 = vunpack.c.l.b16 %v2163
    %v2203 = vunpack.c.l.b16 %v2164
    %v2204 = vunpack.c.l.b16 %v2165
    %v2205 = vunpack.c.l.b16 %v2166
    %v2206 = vunpack.c.l.b16 %v2167
    %v2207 = vunpack.c.l.b16 %v2168
    %v2208 = vunpack.c.l.b16 %v2169
    %v2209 = vunpack.c.l.b16 %v2170
    %v2210 = vunpack.c.l.b16 %v2171
    %v2211 = vunpack.c.l.b16 %v2172
    %v2212 = vunpack.c.l.b16 %v2173
    %v2213 = vunpack.c.l.b16 %v2174
    %v2214 = vunpack.c.l.b16 %v2175
    %v2215 = vunpack.c.l.b16 %v2176
    %v2216 = vunpack.c.l.b16 %v2177
    %v2217 = vpack.c.b16 %v2202, %v2201
    %v2218 = vpack.c.b16 %v2204, %v2203
    %v2219 = vpack.c.b16 %v2206, %v2205
    %v2220 = vpack.c.b16 %v2208, %v2207
    %v2221 = vpack.c.b16 %v2210, %v2209
    %v2222 = vpack.c.b16 %v2212, %v2211
    %v2223 = vpack.c.b16 %v2214, %v2213
    %v2224 = vpack.c.b16 %v2216, %v2215
    %2233 = vmatprep.subr.bf16.mxu0 0
    %2234 = vmatpush1.bf16.msra.mxu0 %v2217
    %2235 = vmatprep.subr.bf16.mxu0 0
    %2236 = vmatpush1.bf16.msra.mxu0 %v2218
    %2237 = vmatprep.subr.bf16.mxu0 0
    %2238 = vmatpush1.bf16.msra.mxu0 %v2219
    %2239 = vmatprep.subr.bf16.mxu0 0
    %2240 = vmatpush1.bf16.msra.mxu0 %v2220
    %2241 = vmatprep.subr.bf16.mxu0 0
    %2242 = vmatpush1.bf16.msra.mxu0 %v2221
    %2243 = vmatprep.subr.bf16.mxu0 0
    %2244 = vmatpush1.bf16.msra.mxu0 %v2222
    %2245 = vmatprep.subr.bf16.mxu0 0
    %2246 = vmatpush1.bf16.msra.mxu0 %v2223
    %2247 = vmatprep.subr.bf16.mxu0 0
    %2248 = vmatpush1.bf16.msra.mxu0 %v2224
    %2249 = vmatprep.subr.bf16.mxu0 0
    %2250 = vmatpush1.bf16.msra.mxu0 0
    %2251 = vmatprep.subr.bf16.mxu0 0
    %2252 = vmatpush1.bf16.msra.mxu0 0
    %2253 = vmatprep.subr.bf16.mxu0 0
    %2254 = vmatpush1.bf16.msra.mxu0 0
    %2255 = vmatprep.subr.bf16.mxu0 0
    %2256 = vmatpush1.bf16.msra.mxu0 0
    %2257 = vmatprep.subr.bf16.mxu0 0
    %2258 = vmatpush1.bf16.msra.mxu0 0
    %2259 = vmatprep.subr.bf16.mxu0 0
    %2260 = vmatpush1.bf16.msra.mxu0 0
    %2261 = vmatprep.subr.bf16.mxu0 0
    %2262 = vmatpush1.bf16.msra.mxu0 0
    %2263 = vmatprep.subr.bf16.mxu0 0
    %2264 = vmatpush1.bf16.msra.mxu0 0
    %2265 = vmatprep.mubr.bf16.mxu0 0
    %2266 = vmatmul.mubr.bf16.gmra.mrb[0].mxu0 %v2161
    %v2267 = vpop.f32.mrb[0].mxu0
    %v2268 = vadd.f32 %v2183, %v2267
    %v2269 = vpop.f32.mrb[0].mxu0
    %v2270 = vpop.f32.mrb[0].mxu0
    %v2271 = vpop.f32.mrb[0].mxu0
    %2272 = vdwg.mxu0
    %vm2273 = vcmask 9216
    %2274 = vst.msk [vmem:[#allocation2] sm:$0x3] %vm2273, %v2268
    // Predicated region
    $region66: #{simple_lstm_forward.1} parent=1 // pred_check
      _
    $region67: #{simple_lstm_forward.1} parent=1 // pred_check_branch
      %2276 = sbr.rel (0) target = $region69
    $region68: #{simple_lstm_forward.1} parent=1 // pred_region
      %s2278 = ssub.s32 32, 32
      %2279 = vsyncadd [#allocation3], %s2278
      %s2281 = sshll.u32 [#allocation2], 4
      %s2282 = int_to_ptr.vmem [resolvable:$true] %s2281
      %2284 = dma.vmem_to_hbm [thread:$0]  %s2282, 32, %s16, [#allocation3]
    $region69: #{simple_lstm_forward.1} parent=1 // pred_fallthru
      _
    // Predicated region
    $region70: #{simple_lstm_forward.1} parent=1 // pred_check
      _
    $region71: #{simple_lstm_forward.1} parent=1 // pred_check_branch
      %2286 = sbr.rel (0) target = $region73
    $region72: #{simple_lstm_forward.1} parent=1 // pred_region
      %2287 = dma.done [#allocation3], 32
    $region73: #{simple_lstm_forward.1} parent=1 // pred_fallthru
      _
    %2288 = vsyncpa [#allocation3], 1

</llo_original>
